<compile_context>
chip_gen: v7x
topology: tpu7x:2x2x1
jax: 0.10.0
libtpu: 0.0.40
codegen_flags: <defaults>
</compile_context>

<pallas_src>
import functools
import math

import jax
import jax.numpy as jnp
from jax import lax
from jax.experimental import pallas as pl
from jax.experimental.pallas import tpu as pltpu

_NEG_BIG = -1e30  # plain Python float: safe "-inf" (finite => no inf-inf NaNs)


def _round_up(x, m):
    return (x + m - 1) // m * m


def _largest_tile(total, requested):
    """Largest multiple of 128 that divides `total` and is <= requested (>=128)."""
    best = 128
    t = 128
    while t <= min(requested, total):
        if total % t == 0:
            best = t
        t += 128
    return min(best, total)


def _vmem_budget_bytes():
    """Generation-aware VMEM budget: ~75% of physical, capped at 112 MiB."""
    cap = 64 * 1024 * 1024  # conservative fallback (v7x per-core floor)
    try:
        info = pltpu.get_tpu_info()
        cap = int(getattr(info, "vmem_capacity_bytes", cap))
    except Exception:
        pass
    return min((cap * 3) // 4, 112 * 1024 * 1024)


def _flash_self_attn_kernel(*refs, block_kv, num_kv, has_key_bias):
    """Grid = (num_q_tiles, num_kv_tiles); kv axis is the (arbitrary) reduction axis.

    q_ref:    [tq, Dop]   pre-projected, pre-scaled queries (compute dtype)
    k_ref:    [tk, Dop]   pre-projected keys (compute dtype)
    v_ref:    [tk, Dop]   pre-projected values (compute dtype)
    bias_ref: [1, tk]     additive key-padding bias (only when padded)
    attn_ref: [tq, Sp]    resident attention row-slab (post-exp p during the sweep,
                          normalized softmax after the last kv step)
    ctx_ref:  [tq, Dop]   attn @ V
    """
    if has_key_bias:
        (q_ref, k_ref, v_ref, bias_ref,
         attn_ref, ctx_ref, m_sc, l_sc, acc_sc, mblk_sc) = refs
    else:
        (q_ref, k_ref, v_ref,
         attn_ref, ctx_ref, m_sc, l_sc, acc_sc, mblk_sc) = refs
        bias_ref = None

    ki = pl.program_id(1)

    @pl.when(ki == 0)
    def _init():
        m_sc[...] = jnp.full_like(m_sc, _NEG_BIG)
        l_sc[...] = jnp.zeros_like(l_sc)
        acc_sc[...] = jnp.zeros_like(acc_sc)

    # scores = (q * 1/sqrt(d)) @ k.T : native (bf16) operands, f32 accumulation,
    # contraction over the last dims (no materialized transpose).
    s = lax.dot_general(q_ref[...], k_ref[...], (((1,), (1,)), ((), ())),
                        preferred_element_type=jnp.float32)
    if has_key_bias:
        s = s + bias_ref[...]          # single VPU add; -1e30 on padded key columns

    # Online softmax (flash style) -- one exp per score element, total.
    m_prev = m_sc[...]
    m_new = jnp.maximum(m_prev, jnp.max(s, axis=-1, keepdims=True))
    alpha = jnp.exp(m_prev - m_new)
    p = jnp.exp(s - m_new)
    l_sc[...] = alpha * l_sc[...] + jnp.sum(p, axis=-1, keepdims=True)
    acc_sc[...] = alpha * acc_sc[...] + jnp.dot(
        p.astype(v_ref.dtype), v_ref[...], preferred_element_type=jnp.float32)
    m_sc[...] = m_new
    mblk_sc[ki] = m_new                # remember this block's reference max

    # Store post-exp p (range (0,1], bf16-friendly) into the resident row-slab.
    col0 = pl.multiple_of(ki * block_kv, block_kv)
    attn_ref[:, pl.ds(col0, block_kv)] = p.astype(attn_ref.dtype)

    @pl.when(ki == num_kv - 1)
    def _finalize():
        m_fin = m_sc[...]
        inv_l = 1.0 / l_sc[...]        # exact: attn weights are the primary output
        # Per-block rescale: true_weight = p_j * exp(m_j - m_fin) / l.
        # Cheap VPU multiplies over the slab; no second exp pass over S^2 elements.
        for j in range(num_kv):        # static unroll (num_kv is compile-time)
            f = jnp.exp(mblk_sc[j] - m_fin) * inv_l
            lo = j * block_kv
            blk = attn_ref[:, lo:lo + block_kv].astype(jnp.float32)
            attn_ref[:, lo:lo + block_kv] = (blk * f).astype(attn_ref.dtype)
        ctx_ref[...] = (acc_sc[...] * inv_l).astype(ctx_ref.dtype)


@functools.partial(jax.jit,
                   static_argnames=("block_q", "block_kv", "attn_dtype", "compute_dtype"))
def self_attention(x, w_query, w_key, w_value, *, block_q=None, block_kv=256,
                   attn_dtype=jnp.bfloat16, compute_dtype=jnp.bfloat16):
    """x: [S, D_in]; w_*: [D_in, D_out] (x @ W == nn.Linear(D_in, D_out, bias=False)).

    Returns (attention_weights [S, S] in attn_dtype, context [S, D_out] in x.dtype).
    """
    seq, dim_in = x.shape
    dim_out = w_query.shape[1]
    assert w_query.shape == (dim_in, dim_out)
    assert w_key.shape == (dim_in, dim_out)
    assert w_value.shape == (dim_in, dim_out)

    # ---- Projections hoisted out of the kernel (computed once, in f32 XLA). ----
    scale = 1.0 / math.sqrt(float(dim_out))   # reference: / keys.shape[-1] ** 0.5
    q = (x @ w_query) * scale                 # scale folded into Q once: O(S*D)
    k = x @ w_key
    v = x @ w_value

    # Pad seq and d_out to multiples of 128 so all MXU contractions and output
    # blocks are lane-dense.  D_in never enters the kernel, so it needs no padding.
    sp = _round_up(seq, 128)
    dop = _round_up(dim_out, 128)

    # ---- Generation-aware tile / VMEM budgeting. ----
    budget = _vmem_budget_bytes()
    req_q = block_q if block_q is not None else (512 if budget >= 90 * 2**20 else 256)
    tq = _largest_tile(sp, req_q)
    tk = _largest_tile(sp, block_kv)

    attn_bytes = jnp.dtype(attn_dtype).itemsize
    cbytes = jnp.dtype(compute_dtype).itemsize

    def _fits(tq_):
        nk_ = sp // tk
        use = (2 * tq_ * sp * attn_bytes            # resident attn row-slab (2 bufs)
               + 2 * tq_ * dop * 4                  # ctx output (2 bufs)
               + 2 * (tq_ + 2 * tk) * dop * cbytes  # q / k / v input buffers
               + tq_ * dop * 4                      # f32 context accumulator
               + (nk_ + 3) * tq_ * 128 * 4)         # m, l, per-block-m (lane-padded)
        return use <= budget

    while tq > 128 and not _fits(tq):
        tq = _largest_tile(sp, tq - 128)

    nq, nk = sp // tq, sp // tk
    needs_mask = sp != seq

    def _pad_cast(a):
        a = jnp.pad(a, ((0, sp - seq), (0, dop - dim_out)))
        return a.astype(compute_dtype)

    q_p, k_p, v_p = _pad_cast(q), _pad_cast(k), _pad_cast(v)

    inputs = [q_p, k_p, v_p]
    in_specs = [
        pl.BlockSpec((tq, dop), lambda qi, ki: (qi, 0)),   # Q tile (constant over kv)
        pl.BlockSpec((tk, dop), lambda qi, ki: (ki, 0)),   # K tile (streamed)
        pl.BlockSpec((tk, dop), lambda qi, ki: (ki, 0)),   # V tile (streamed)
    ]
    if needs_mask:
        key_bias = jnp.where(jnp.arange(sp) < seq, 0.0, _NEG_BIG)
        inputs.append(key_bias.astype(jnp.float32)[None, :])
        in_specs.append(pl.BlockSpec((1, tk), lambda qi, ki: (0, ki)))

    kernel = functools.partial(_flash_self_attn_kernel,
                               block_kv=tk, num_kv=nk, has_key_bias=needs_mask)

    attn_p, ctx_p = pl.pallas_call(
        kernel,
        out_shape=(
            jax.ShapeDtypeStruct((sp, sp), attn_dtype),
            jax.ShapeDtypeStruct((sp, dop), x.dtype),
        ),
        grid_spec=pltpu.PrefetchScalarGridSpec(
            num_scalar_prefetch=0,
            grid=(nq, nk),
            in_specs=in_specs,
            out_specs=(
                pl.BlockSpec((tq, sp), lambda qi, ki: (qi, 0)),    # attn row-slab
                pl.BlockSpec((tq, dop), lambda qi, ki: (qi, 0)),   # context
            ),
            scratch_shapes=[
                pltpu.VMEM((tq, 1), jnp.float32),        # running max m
                pltpu.VMEM((tq, 1), jnp.float32),        # running denom l
                pltpu.VMEM((tq, dop), jnp.float32),      # context accumulator
                pltpu.VMEM((nk, tq, 1), jnp.float32),    # per-kv-block max
            ],
        ),
        compiler_params=pltpu.CompilerParams(
            dimension_semantics=("parallel", "arbitrary"),
            vmem_limit_bytes=int(budget),
        ),
    )(*inputs)

    # Slice the padding off only when padding was actually added (avoids an extra
    # O(S^2) HBM pass for already-aligned sequences).
    attn = attn_p if sp == seq else attn_p[:seq, :seq]
    ctx = ctx_p if (sp == seq and dop == dim_out) else ctx_p[:seq, :dim_out]
    return attn, ctx


def _reference(x, wq, wk, wv):
    q = x @ wq
    k = x @ wk
    v = x @ wv
    scores = q @ k.T
    w = jax.nn.softmax(scores / (k.shape[-1] ** 0.5), axis=-1)
    return w, w @ v


if __name__ == "__main__":
    key = jax.random.PRNGKey(0)
    keys = jax.random.split(key, 8)

    # Case 1: shapes implied by the module (single tile after padding).
    seq, dim_in, dim_out = 8, 32, 16
    x = jax.random.normal(keys[0], (seq, dim_in), dtype=jnp.float32)
    w_query = jax.random.normal(keys[1], (dim_in, dim_out), dtype=jnp.float32) * 0.1
    w_key = jax.random.normal(keys[2], (dim_in, dim_out), dtype=jnp.float32) * 0.1
    w_value = jax.random.normal(keys[3], (dim_in, dim_out), dtype=jnp.float32) * 0.1

    attn, ctx = self_attention(x, w_query, w_key, w_value)
    jax.block_until_ready((attn, ctx))

    ref_attn, ref_ctx = _reference(x, w_query, w_key, w_value)
    assert attn.shape == (seq, seq) and ctx.shape == (seq, dim_out)
    attn_f = attn.astype(jnp.float32)
    assert jnp.allclose(attn_f, ref_attn, atol=1e-2, rtol=1e-2)
    assert jnp.allclose(ctx.astype(jnp.float32), ref_ctx, atol=1e-2, rtol=1e-2)
    assert bool(jnp.allclose(jnp.sum(attn_f, axis=-1), 1.0, atol=1e-2))

    # Case 2: multiple kv tiles -> online softmax, per-block rescale, key-pad bias.
    seq2, dim_in2, dim_out2 = 200, 64, 48
    x2 = jax.random.normal(keys[4], (seq2, dim_in2), dtype=jnp.float32)
    wq2 = jax.random.normal(keys[5], (dim_in2, dim_out2), dtype=jnp.float32) * 0.05
    wk2 = jax.random.normal(keys[6], (dim_in2, dim_out2), dtype=jnp.float32) * 0.05
    wv2 = jax.random.normal(keys[7], (dim_in2, dim_out2), dtype=jnp.float32) * 0.05

    attn2, ctx2 = self_attention(x2, wq2, wk2, wv2, block_q=128, block_kv=128)
    jax.block_until_ready((attn2, ctx2))

    ref_attn2, ref_ctx2 = _reference(x2, wq2, wk2, wv2)
    assert attn2.shape == (seq2, seq2) and ctx2.shape == (seq2, dim_out2)
    attn2_f = attn2.astype(jnp.float32)
    assert jnp.allclose(attn2_f, ref_attn2, atol=1e-2, rtol=1e-2)
    assert jnp.allclose(ctx2.astype(jnp.float32), ref_ctx2, atol=1e-2, rtol=1e-2)
    assert bool(jnp.allclose(jnp.sum(attn2_f, axis=-1), 1.0, atol=1e-2))

    print("KERNEL_OK")
</pallas_src>

<mosaic_0001>
module attributes {stable_mosaic.version = 11 : i64} {
  func.func @_flash_self_attn_kernel(%arg0: i32, %arg1: i32, %arg2: memref<128x128xbf16, #tpu.memory_space<vmem>>, %arg3: memref<128x128xbf16, #tpu.memory_space<vmem>>, %arg4: memref<128x128xbf16, #tpu.memory_space<vmem>>, %arg5: memref<1x128xf32, #tpu.memory_space<vmem>>, %arg6: memref<128x128xbf16, #tpu.memory_space<vmem>>, %arg7: memref<128x128xf32, #tpu.memory_space<vmem>>, %arg8: memref<128x1xf32, #tpu.memory_space<vmem>>, %arg9: memref<128x1xf32, #tpu.memory_space<vmem>>, %arg10: memref<128x128xf32, #tpu.memory_space<vmem>>, %arg11: memref<1x128x1xf32, #tpu.memory_space<vmem>>) attributes {dimension_semantics = [#tpu.dimension_semantics<parallel>, #tpu.dimension_semantics<arbitrary>], iteration_bounds = array<i64: 1, 1>, scalar_prefetch = 0 : i64, scratch_operands = 4 : i64, tpu.core_type = #tpu.core_type<tc>, window_params = [{transform_indices = @transform_0, window_bounds = array<i64: 128, 128>}, {transform_indices = @transform_1, window_bounds = array<i64: 128, 128>}, {transform_indices = @transform_2, window_bounds = array<i64: 128, 128>}, {transform_indices = @transform_3, window_bounds = array<i64: 1, 128>}, {transform_indices = @transform_4, window_bounds = array<i64: 128, 128>}, {transform_indices = @transform_5, window_bounds = array<i64: 128, 128>}]} {
    %c0_i32 = arith.constant 0 : i32
    %0 = arith.cmpi eq, %arg1, %c0_i32 : i32
    %1 = arith.extui %0 : i1 to i32
    %c0_i32_0 = arith.constant 0 : i32
    %2 = arith.cmpi ne, %1, %c0_i32_0 : i32
    scf.if %2 {
      %cst_28 = arith.constant -1.000000e+30 : f32
      %45 = vector.broadcast %cst_28 : f32 to vector<128x1xf32>
      %c0_29 = arith.constant 0 : index
      %c0_30 = arith.constant 0 : index
      %46 = vector.load %arg8[%c0_29, %c0_30] : memref<128x1xf32, #tpu.memory_space<vmem>>, vector<128x1xf32>
      tpu.vector_store %arg8[%c0_29, %c0_30], %45 {strides = array<i32>} : memref<128x1xf32, #tpu.memory_space<vmem>>, vector<128x1xf32>,
      %cst_31 = arith.constant 0.000000e+00 : f32
      %47 = vector.broadcast %cst_31 : f32 to vector<128x1xf32>
      %c0_32 = arith.constant 0 : index
      %c0_33 = arith.constant 0 : index
      %48 = vector.load %arg9[%c0_32, %c0_33] : memref<128x1xf32, #tpu.memory_space<vmem>>, vector<128x1xf32>
      tpu.vector_store %arg9[%c0_32, %c0_33], %47 {strides = array<i32>} : memref<128x1xf32, #tpu.memory_space<vmem>>, vector<128x1xf32>,
      %cst_34 = arith.constant 0.000000e+00 : f32
      %49 = vector.broadcast %cst_34 : f32 to vector<128x128xf32>
      %c0_35 = arith.constant 0 : index
      %c0_36 = arith.constant 0 : index
      %50 = vector.load %arg10[%c0_35, %c0_36] : memref<128x128xf32, #tpu.memory_space<vmem>>, vector<128x128xf32>
      tpu.vector_store %arg10[%c0_35, %c0_36], %49 {strides = array<i32>} : memref<128x128xf32, #tpu.memory_space<vmem>>, vector<128x128xf32>,
    } else {
    }
    %c0 = arith.constant 0 : index
    %c0_1 = arith.constant 0 : index
    %3 = vector.load %arg2[%c0, %c0_1] : memref<128x128xbf16, #tpu.memory_space<vmem>>, vector<128x128xbf16>
    %c0_2 = arith.constant 0 : index
    %c0_3 = arith.constant 0 : index
    %4 = vector.load %arg3[%c0_2, %c0_3] : memref<128x128xbf16, #tpu.memory_space<vmem>>, vector<128x128xbf16>
    %cst = arith.constant dense<0.000000e+00> : vector<128x128xf32>
    %5 = tpu.matmul %3, %4, %cst {dimension_numbers = #tpu.dot_dimension_numbers<[1], [1], [0], [0], [0, 0, 1, 0], [], []>} : vector<128x128xbf16>, vector<128x128xbf16>, vector<128x128xf32> -> vector<128x128xf32>
    %c0_4 = arith.constant 0 : index
    %c0_5 = arith.constant 0 : index
    %6 = vector.load %arg5[%c0_4, %c0_5] : memref<1x128xf32, #tpu.memory_space<vmem>>, vector<1x128xf32>
    %7 = vector.broadcast %6 : vector<1x128xf32> to vector<128x128xf32>
    %8 = arith.addf %5, %7 : vector<128x128xf32>
    %c0_6 = arith.constant 0 : index
    %c0_7 = arith.constant 0 : index
    %9 = vector.load %arg8[%c0_6, %c0_7] : memref<128x1xf32, #tpu.memory_space<vmem>>, vector<128x1xf32>
    %cst_8 = arith.constant dense<0xFF800000> : vector<128xf32>
    %10 = vector.multi_reduction <maximumf>, %8, %cst_8 [1] : vector<128x128xf32> to vector<128xf32>
    %11 = vector.shape_cast %10 : vector<128xf32> to vector<128x1xf32>
    %12 = arith.maximumf %9, %11 : vector<128x1xf32>
    %13 = arith.subf %9, %12 : vector<128x1xf32>
    %14 = math.exp %13 : vector<128x1xf32>
    %15 = vector.broadcast %12 : vector<128x1xf32> to vector<128x128xf32>
    %16 = arith.subf %8, %15 : vector<128x128xf32>
    %17 = math.exp %16 : vector<128x128xf32>
    %c0_9 = arith.constant 0 : index
    %c0_10 = arith.constant 0 : index
    %18 = vector.load %arg9[%c0_9, %c0_10] : memref<128x1xf32, #tpu.memory_space<vmem>>, vector<128x1xf32>
    %19 = arith.mulf %14, %18 : vector<128x1xf32>
    %cst_11 = arith.constant dense<0.000000e+00> : vector<128xf32>
    %20 = vector.multi_reduction <add>, %17, %cst_11 [1] : vector<128x128xf32> to vector<128xf32>
    %21 = vector.shape_cast %20 : vector<128xf32> to vector<128x1xf32>
    %22 = arith.addf %19, %21 : vector<128x1xf32>
    %c0_12 = arith.constant 0 : index
    %c0_13 = arith.constant 0 : index
    %23 = vector.load %arg9[%c0_12, %c0_13] : memref<128x1xf32, #tpu.memory_space<vmem>>, vector<128x1xf32>
    tpu.vector_store %arg9[%c0_12, %c0_13], %22 {strides = array<i32>} : memref<128x1xf32, #tpu.memory_space<vmem>>, vector<128x1xf32>,
    %c0_14 = arith.constant 0 : index
    %c0_15 = arith.constant 0 : index
    %24 = vector.load %arg10[%c0_14, %c0_15] : memref<128x128xf32, #tpu.memory_space<vmem>>, vector<128x128xf32>
    %25 = vector.broadcast %14 : vector<128x1xf32> to vector<128x128xf32>
    %26 = arith.mulf %25, %24 : vector<128x128xf32>
    %27 = arith.truncf %17 : vector<128x128xf32> to vector<128x128xbf16>
    %c0_16 = arith.constant 0 : index
    %c0_17 = arith.constant 0 : index
    %28 = vector.load %arg4[%c0_16, %c0_17] : memref<128x128xbf16, #tpu.memory_space<vmem>>, vector<128x128xbf16>
    %cst_18 = arith.constant dense<0.000000e+00> : vector<128x128xf32>
    %29 = tpu.matmul %27, %28, %cst_18 {dimension_numbers = #tpu.dot_dimension_numbers<[1], [0], [0], [1], [0, 0, 1, 1], [], []>} : vector<128x128xbf16>, vector<128x128xbf16>, vector<128x128xf32> -> vector<128x128xf32>
    %30 = arith.addf %26, %29 : vector<128x128xf32>
    %c0_19 = arith.constant 0 : index
    %c0_20 = arith.constant 0 : index
    %31 = vector.load %arg10[%c0_19, %c0_20] : memref<128x128xf32, #tpu.memory_space<vmem>>, vector<128x128xf32>
    tpu.vector_store %arg10[%c0_19, %c0_20], %30 {strides = array<i32>} : memref<128x128xf32, #tpu.memory_space<vmem>>, vector<128x128xf32>,
    %c0_21 = arith.constant 0 : index
    %c0_22 = arith.constant 0 : index
    %32 = vector.load %arg8[%c0_21, %c0_22] : memref<128x1xf32, #tpu.memory_space<vmem>>, vector<128x1xf32>
    tpu.vector_store %arg8[%c0_21, %c0_22], %12 {strides = array<i32>} : memref<128x1xf32, #tpu.memory_space<vmem>>, vector<128x1xf32>,
    %33 = arith.index_cast %arg1 : i32 to index
    %c0_23 = arith.constant 0 : index
    %c0_24 = arith.constant 0 : index
    %34 = vector.load %arg11[%33, %c0_23, %c0_24] : memref<1x128x1xf32, #tpu.memory_space<vmem>>, vector<1x128x1xf32>
    %35 = vector.shape_cast %34 : vector<1x128x1xf32> to vector<128x1xf32>
    %36 = vector.shape_cast %12 : vector<128x1xf32> to vector<1x128x1xf32>
    tpu.vector_store %arg11[%33, %c0_23, %c0_24], %36 {strides = array<i32>} : memref<1x128x1xf32, #tpu.memory_space<vmem>>, vector<1x128x1xf32>,
    %c128_i32 = arith.constant 128 : i32
    %37 = arith.muli %arg1, %c128_i32 : i32
    %38 = tpu.assume_multiple %37, 128 : i32
    %39 = arith.truncf %17 : vector<128x128xf32> to vector<128x128xbf16>
    %c0_25 = arith.constant 0 : index
    %40 = arith.index_cast %38 : i32 to index
    %41 = vector.load %arg6[%c0_25, %40] : memref<128x128xbf16, #tpu.memory_space<vmem>>, vector<128x128xbf16>
    tpu.vector_store %arg6[%c0_25, %40], %39 {strides = array<i32>} : memref<128x128xbf16, #tpu.memory_space<vmem>>, vector<128x128xbf16>,
    %c0_i32_26 = arith.constant 0 : i32
    %42 = arith.cmpi eq, %arg1, %c0_i32_26 : i32
    %43 = arith.extui %42 : i1 to i32
    %c0_i32_27 = arith.constant 0 : i32
    %44 = arith.cmpi ne, %43, %c0_i32_27 : i32
    scf.if %44 {
      %c0_28 = arith.constant 0 : index
      %c0_29 = arith.constant 0 : index
      %45 = vector.load %arg8[%c0_28, %c0_29] : memref<128x1xf32, #tpu.memory_space<vmem>>, vector<128x1xf32>
      %c0_30 = arith.constant 0 : index
      %c0_31 = arith.constant 0 : index
      %46 = vector.load %arg9[%c0_30, %c0_31] : memref<128x1xf32, #tpu.memory_space<vmem>>, vector<128x1xf32>
      %cst_32 = arith.constant 1.000000e+00 : f32
      %47 = vector.broadcast %cst_32 : f32 to vector<128x1xf32>
      %48 = arith.divf %47, %46 : vector<128x1xf32>
      %c0_33 = arith.constant 0 : index
      %c0_34 = arith.constant 0 : index
      %c0_35 = arith.constant 0 : index
      %49 = vector.load %arg11[%c0_33, %c0_34, %c0_35] : memref<1x128x1xf32, #tpu.memory_space<vmem>>, vector<1x128x1xf32>
      %50 = vector.shape_cast %49 : vector<1x128x1xf32> to vector<128x1xf32>
      %51 = arith.subf %50, %45 : vector<128x1xf32>
      %52 = math.exp %51 : vector<128x1xf32>
      %53 = arith.mulf %52, %48 : vector<128x1xf32>
      %c0_36 = arith.constant 0 : index
      %c0_37 = arith.constant 0 : index
      %54 = vector.load %arg6[%c0_36, %c0_37] : memref<128x128xbf16, #tpu.memory_space<vmem>>, vector<128x128xbf16>
      %55 = arith.extf %54 : vector<128x128xbf16> to vector<128x128xf32>
      %56 = vector.broadcast %53 : vector<128x1xf32> to vector<128x128xf32>
      %57 = arith.mulf %55, %56 : vector<128x128xf32>
      %58 = arith.truncf %57 : vector<128x128xf32> to vector<128x128xbf16>
      %c0_38 = arith.constant 0 : index
      %c0_39 = arith.constant 0 : index
      %59 = vector.load %arg6[%c0_38, %c0_39] : memref<128x128xbf16, #tpu.memory_space<vmem>>, vector<128x128xbf16>
      tpu.vector_store %arg6[%c0_38, %c0_39], %58 {strides = array<i32>} : memref<128x128xbf16, #tpu.memory_space<vmem>>, vector<128x128xbf16>,
      %c0_40 = arith.constant 0 : index
      %c0_41 = arith.constant 0 : index
      %60 = vector.load %arg10[%c0_40, %c0_41] : memref<128x128xf32, #tpu.memory_space<vmem>>, vector<128x128xf32>
      %61 = vector.broadcast %48 : vector<128x1xf32> to vector<128x128xf32>
      %62 = arith.mulf %60, %61 : vector<128x128xf32>
      %c0_42 = arith.constant 0 : index
      %c0_43 = arith.constant 0 : index
      %63 = vector.load %arg7[%c0_42, %c0_43] : memref<128x128xf32, #tpu.memory_space<vmem>>, vector<128x128xf32>
      tpu.vector_store %arg7[%c0_42, %c0_43], %62 {strides = array<i32>} : memref<128x128xf32, #tpu.memory_space<vmem>>, vector<128x128xf32>,
    } else {
    }
    return
  }
  func.func @transform_0(%arg0: i32, %arg1: i32) -> (i32, i32) {
    %c0_i32 = arith.constant 0 : i32
    %c0_i32_0 = arith.constant 0 : i32
    return %arg0, %c0_i32 : i32, i32
  }
  func.func @transform_1(%arg0: i32, %arg1: i32) -> (i32, i32) {
    %c0_i32 = arith.constant 0 : i32
    %c0_i32_0 = arith.constant 0 : i32
    return %arg1, %c0_i32 : i32, i32
  }
  func.func @transform_2(%arg0: i32, %arg1: i32) -> (i32, i32) {
    %c0_i32 = arith.constant 0 : i32
    %c0_i32_0 = arith.constant 0 : i32
    return %arg1, %c0_i32 : i32, i32
  }
  func.func @transform_3(%arg0: i32, %arg1: i32) -> (i32, i32) {
    %c0_i32 = arith.constant 0 : i32
    %c0_i32_0 = arith.constant 0 : i32
    return %c0_i32, %arg1 : i32, i32
  }
  func.func @transform_4(%arg0: i32, %arg1: i32) -> (i32, i32) {
    %c0_i32 = arith.constant 0 : i32
    %c0_i32_0 = arith.constant 0 : i32
    return %arg0, %c0_i32 : i32, i32
  }
  func.func @transform_5(%arg0: i32, %arg1: i32) -> (i32, i32) {
    %c0_i32 = arith.constant 0 : i32
    %c0_i32_0 = arith.constant 0 : i32
    return %arg0, %c0_i32 : i32, i32
  }
}

</mosaic_0001>

<llo_original>
// kernel: self_attention.1
$region0: #{self_attention.1}
  #allocation0 [shape = 'u32[]', space=smem, size = 0x4, offset = 0x4, fixed_abs, tag = 'smem constant byte address 0x4 - core index']
  #allocation1 [shape = 'u32[144,128]{1,0:T(1,128)}', space=vmem, size = 0x12000, scoped, tag = 'internal scratch']
  #allocation2 [shape = 'f32[128,1]{1,0:T(8,128)}', space=vmem, size = 0x10000, scoped, tag = 'scratch operand']
  #allocation3 [shape = 'f32[128,1]{1,0:T(8,128)}', space=vmem, size = 0x10000, scoped, tag = 'scratch operand']
  #allocation4 [shape = 'f32[128,128]{1,0:T(8,128)}', space=vmem, size = 0x10000, scoped, tag = 'scratch operand']
  #allocation5 [shape = 'f32[1,128,1]{2,1,0:T(8,128)}', space=vmem, size = 0x10000, scoped, tag = 'scratch operand']
  %s0 = inlined_call_operand.vmem [shape: bf16[128,128], index: 0, kind: input, shape index: {}]
  %s1 = inlined_call_operand.vmem [shape: bf16[128,128], index: 1, kind: input, shape index: {}]
  %s2 = inlined_call_operand.vmem [shape: bf16[128,128], index: 2, kind: input, shape index: {}]
  %s3 = inlined_call_operand.vmem [shape: f32[1,128], index: 3, kind: input, shape index: {}]
  %s4 = inlined_call_operand.vmem [shape: bf16[128,128], index: 4, kind: output, shape index: {0}]
  %s5 = inlined_call_operand.vmem [shape: f32[128,128], index: 5, kind: output, shape index: {1}]
  %6 = xla_tuple %s4, %s5
  %s7 = sld [smem:[#allocation0]]
  $region42: #{self_attention.1} parent=0
    _
  %s9 = ssub.s32 1, %s7
  %s10 = scalar_select 0, %s9, %s7
  // Predicated region
  $region2: #{self_attention.1} parent=0 // pred_check
    _
  $region3: #{self_attention.1} parent=0 // pred_check_branch
    %12 = sbr.rel (0) target = $region5
  $region4: #{self_attention.1} parent=0 // pred_region
    _
  $region5: #{self_attention.1} parent=0 // pred_fallthru
    _
  // Predicated region
  $region6: #{self_attention.1} parent=0 // pred_check
    _
  $region7: #{self_attention.1} parent=0 // pred_check_branch
    %14 = sbr.rel (0) target = $region9
  $region8: #{self_attention.1} parent=0 // pred_region
    _
  $region9: #{self_attention.1} parent=0 // pred_fallthru
    _
  // Predicated region
  $region10: #{self_attention.1} parent=0 // pred_check
    _
  $region11: #{self_attention.1} parent=0 // pred_check_branch
    %16 = sbr.rel (0) target = $region13
  $region12: #{self_attention.1} parent=0 // pred_region
    _
  $region13: #{self_attention.1} parent=0 // pred_fallthru
    _
  // Predicated region
  $region14: #{self_attention.1} parent=0 // pred_check
    _
  $region15: #{self_attention.1} parent=0 // pred_check_branch
    %18 = sbr.rel (0) target = $region17
  $region16: #{self_attention.1} parent=0 // pred_region
    _
  $region17: #{self_attention.1} parent=0 // pred_fallthru
    _
  %p20 = scmp.eq.s32.totalorder 0, 0
  // Predicated region
  $region18: #{self_attention.1} parent=0 // pred_check
    %p21 = pneg %p20
  $region19: #{self_attention.1} parent=0 // pred_check_branch
    %23 = sbr.rel (%p21) target = $region21
  $region20: #{self_attention.1} parent=0 // pred_region
    %vm24 = vcmask 7168
    %25 = vst.msk [vmem:[#allocation2] sm:$0xff] %vm24, -1e+30
    %26 = vst.msk [vmem:[#allocation2 + $0x8] sm:$0xff] %vm24, -1e+30
    %27 = vst.msk [vmem:[#allocation2 + $0x10] sm:$0xff] %vm24, -1e+30
    %28 = vst.msk [vmem:[#allocation2 + $0x18] sm:$0xff] %vm24, -1e+30
    %29 = vst.msk [vmem:[#allocation2 + $0x20] sm:$0xff] %vm24, -1e+30
    %30 = vst.msk [vmem:[#allocation2 + $0x28] sm:$0xff] %vm24, -1e+30
    %31 = vst.msk [vmem:[#allocation2 + $0x30] sm:$0xff] %vm24, -1e+30
    %32 = vst.msk [vmem:[#allocation2 + $0x38] sm:$0xff] %vm24, -1e+30
    %33 = vst.msk [vmem:[#allocation2 + $0x40] sm:$0xff] %vm24, -1e+30
    %34 = vst.msk [vmem:[#allocation2 + $0x48] sm:$0xff] %vm24, -1e+30
    %35 = vst.msk [vmem:[#allocation2 + $0x50] sm:$0xff] %vm24, -1e+30
    %36 = vst.msk [vmem:[#allocation2 + $0x58] sm:$0xff] %vm24, -1e+30
    %37 = vst.msk [vmem:[#allocation2 + $0x60] sm:$0xff] %vm24, -1e+30
    %38 = vst.msk [vmem:[#allocation2 + $0x68] sm:$0xff] %vm24, -1e+30
    %39 = vst.msk [vmem:[#allocation2 + $0x70] sm:$0xff] %vm24, -1e+30
    %40 = vst.msk [vmem:[#allocation2 + $0x78] sm:$0xff] %vm24, -1e+30
    %41 = vst.msk [vmem:[#allocation3] sm:$0xff] %vm24, 0.0
    %42 = vst.msk [vmem:[#allocation3 + $0x8] sm:$0xff] %vm24, 0.0
    %43 = vst.msk [vmem:[#allocation3 + $0x10] sm:$0xff] %vm24, 0.0
    %44 = vst.msk [vmem:[#allocation3 + $0x18] sm:$0xff] %vm24, 0.0
    %45 = vst.msk [vmem:[#allocation3 + $0x20] sm:$0xff] %vm24, 0.0
    %46 = vst.msk [vmem:[#allocation3 + $0x28] sm:$0xff] %vm24, 0.0
    %47 = vst.msk [vmem:[#allocation3 + $0x30] sm:$0xff] %vm24, 0.0
    %48 = vst.msk [vmem:[#allocation3 + $0x38] sm:$0xff] %vm24, 0.0
    %49 = vst.msk [vmem:[#allocation3 + $0x40] sm:$0xff] %vm24, 0.0
    %50 = vst.msk [vmem:[#allocation3 + $0x48] sm:$0xff] %vm24, 0.0
    %51 = vst.msk [vmem:[#allocation3 + $0x50] sm:$0xff] %vm24, 0.0
    %52 = vst.msk [vmem:[#allocation3 + $0x58] sm:$0xff] %vm24, 0.0
    %53 = vst.msk [vmem:[#allocation3 + $0x60] sm:$0xff] %vm24, 0.0
    %54 = vst.msk [vmem:[#allocation3 + $0x68] sm:$0xff] %vm24, 0.0
    %55 = vst.msk [vmem:[#allocation3 + $0x70] sm:$0xff] %vm24, 0.0
    %56 = vst.msk [vmem:[#allocation3 + $0x78] sm:$0xff] %vm24, 0.0
    %57 = vst [vmem:[#allocation4] sm:$0xff] 0.0
    %58 = vst [vmem:[#allocation4 + $0x8] sm:$0xff] 0.0
    %59 = vst [vmem:[#allocation4 + $0x10] sm:$0xff] 0.0
    %60 = vst [vmem:[#allocation4 + $0x18] sm:$0xff] 0.0
    %61 = vst [vmem:[#allocation4 + $0x20] sm:$0xff] 0.0
    %62 = vst [vmem:[#allocation4 + $0x28] sm:$0xff] 0.0
    %63 = vst [vmem:[#allocation4 + $0x30] sm:$0xff] 0.0
    %64 = vst [vmem:[#allocation4 + $0x38] sm:$0xff] 0.0
    %65 = vst [vmem:[#allocation4 + $0x40] sm:$0xff] 0.0
    %66 = vst [vmem:[#allocation4 + $0x48] sm:$0xff] 0.0
    %67 = vst [vmem:[#allocation4 + $0x50] sm:$0xff] 0.0
    %68 = vst [vmem:[#allocation4 + $0x58] sm:$0xff] 0.0
    %69 = vst [vmem:[#allocation4 + $0x60] sm:$0xff] 0.0
    %70 = vst [vmem:[#allocation4 + $0x68] sm:$0xff] 0.0
    %71 = vst [vmem:[#allocation4 + $0x70] sm:$0xff] 0.0
    %72 = vst [vmem:[#allocation4 + $0x78] sm:$0xff] 0.0
  $region21: #{self_attention.1} parent=0 // pred_fallthru
    _
  %v73 = vld [vmem:[%s0] sm:$0xf]
  %v74 = vld [vmem:[%s0 + $0x4] sm:$0xf]
  %v75 = vld [vmem:[%s0 + $0x8] sm:$0xf]
  %v76 = vld [vmem:[%s0 + $0xc] sm:$0xf]
  %v77 = vld [vmem:[%s0 + $0x10] sm:$0xf]
  %v78 = vld [vmem:[%s0 + $0x14] sm:$0xf]
  %v79 = vld [vmem:[%s0 + $0x18] sm:$0xf]
  %v80 = vld [vmem:[%s0 + $0x1c] sm:$0xf]
  %v81 = vld [vmem:[%s0 + $0x20] sm:$0xf]
  %v82 = vld [vmem:[%s0 + $0x24] sm:$0xf]
  %v83 = vld [vmem:[%s0 + $0x28] sm:$0xf]
  %v84 = vld [vmem:[%s0 + $0x2c] sm:$0xf]
  %v85 = vld [vmem:[%s0 + $0x30] sm:$0xf]
  %v86 = vld [vmem:[%s0 + $0x34] sm:$0xf]
  %v87 = vld [vmem:[%s0 + $0x38] sm:$0xf]
  %v88 = vld [vmem:[%s0 + $0x3c] sm:$0xf]
  %v89 = vld [vmem:[%s1] sm:$0xf]
  %v90 = vld [vmem:[%s1 + $0x4] sm:$0xf]
  %v91 = vld [vmem:[%s1 + $0x8] sm:$0xf]
  %v92 = vld [vmem:[%s1 + $0xc] sm:$0xf]
  %v93 = vld [vmem:[%s1 + $0x10] sm:$0xf]
  %v94 = vld [vmem:[%s1 + $0x14] sm:$0xf]
  %v95 = vld [vmem:[%s1 + $0x18] sm:$0xf]
  %v96 = vld [vmem:[%s1 + $0x1c] sm:$0xf]
  %v97 = vld [vmem:[%s1 + $0x20] sm:$0xf]
  %v98 = vld [vmem:[%s1 + $0x24] sm:$0xf]
  %v99 = vld [vmem:[%s1 + $0x28] sm:$0xf]
  %v100 = vld [vmem:[%s1 + $0x2c] sm:$0xf]
  %v101 = vld [vmem:[%s1 + $0x30] sm:$0xf]
  %v102 = vld [vmem:[%s1 + $0x34] sm:$0xf]
  %v103 = vld [vmem:[%s1 + $0x38] sm:$0xf]
  %v104 = vld [vmem:[%s1 + $0x3c] sm:$0xf]
  %v105 = vld [vmem:[%s3] sm:$0x1]
  %v107 = vlaneseq
  %v108 = vshrl.u32 %v107, 7
  %v109 = vsub.s32 0, %v108
  %v110 = vrot.slane %v105, %v109
  %v128 = vunpack.c.l.b16 %v73
  %v129 = vunpack.c.l.b16 %v74
  %v130 = vunpack.c.l.b16 %v75
  %v131 = vunpack.c.l.b16 %v76
  %v132 = vunpack.c.l.b16 %v77
  %v133 = vunpack.c.l.b16 %v78
  %v134 = vunpack.c.l.b16 %v79
  %v135 = vunpack.c.l.b16 %v80
  %v136 = vunpack.c.l.b16 %v81
  %v137 = vunpack.c.l.b16 %v82
  %v138 = vunpack.c.l.b16 %v83
  %v139 = vunpack.c.l.b16 %v84
  %v140 = vunpack.c.l.b16 %v85
  %v141 = vunpack.c.l.b16 %v86
  %v142 = vunpack.c.l.b16 %v87
  %v143 = vunpack.c.l.b16 %v88
  %v144 = vpack.c.b16 %v129, %v128
  %v145 = vpack.c.b16 %v131, %v130
  %v146 = vpack.c.b16 %v133, %v132
  %v147 = vpack.c.b16 %v135, %v134
  %v148 = vpack.c.b16 %v137, %v136
  %v149 = vpack.c.b16 %v139, %v138
  %v150 = vpack.c.b16 %v141, %v140
  %v151 = vpack.c.b16 %v143, %v142
  %v176 = vunpack.c.l.b16 %v89
  %v177 = vunpack.c.l.b16 %v90
  %v178 = vunpack.c.l.b16 %v91
  %v179 = vunpack.c.l.b16 %v92
  %v180 = vunpack.c.l.b16 %v93
  %v181 = vunpack.c.l.b16 %v94
  %v182 = vunpack.c.l.b16 %v95
  %v183 = vunpack.c.l.b16 %v96
  %v184 = vunpack.c.l.b16 %v97
  %v185 = vunpack.c.l.b16 %v98
  %v186 = vunpack.c.l.b16 %v99
  %v187 = vunpack.c.l.b16 %v100
  %v188 = vunpack.c.l.b16 %v101
  %v189 = vunpack.c.l.b16 %v102
  %v190 = vunpack.c.l.b16 %v103
  %v191 = vunpack.c.l.b16 %v104
  %v192 = vpack.c.b16 %v177, %v176
  %v193 = vpack.c.b16 %v179, %v178
  %v194 = vpack.c.b16 %v181, %v180
  %v195 = vpack.c.b16 %v183, %v182
  %v196 = vpack.c.b16 %v185, %v184
  %v197 = vpack.c.b16 %v187, %v186
  %v198 = vpack.c.b16 %v189, %v188
  %v199 = vpack.c.b16 %v191, %v190
  %208 = vmatprep.subr.bf16.mxu0 0
  %209 = vmatpush1.bf16.xpose.msra.mxu0 %v192
  %210 = vmatprep.subr.bf16.mxu0 0
  %211 = vmatpush1.bf16.xpose.msra.mxu0 %v193
  %212 = vmatprep.subr.bf16.mxu0 0
  %213 = vmatpush1.bf16.xpose.msra.mxu0 %v194
  %214 = vmatprep.subr.bf16.mxu0 0
  %215 = vmatpush1.bf16.xpose.msra.mxu0 %v195
  %216 = vmatprep.subr.bf16.mxu0 0
  %217 = vmatpush1.bf16.xpose.msra.mxu0 %v196
  %218 = vmatprep.subr.bf16.mxu0 0
  %219 = vmatpush1.bf16.xpose.msra.mxu0 %v197
  %220 = vmatprep.subr.bf16.mxu0 0
  %221 = vmatpush1.bf16.xpose.msra.mxu0 %v198
  %222 = vmatprep.subr.bf16.mxu0 0
  %223 = vmatpush1.bf16.xpose.msra.mxu0 %v199
  %224 = vmatprep.subr.bf16.mxu0 0
  %225 = vmatpush1.bf16.xpose.msra.mxu0 0
  %226 = vmatprep.subr.bf16.mxu0 0
  %227 = vmatpush1.bf16.xpose.msra.mxu0 0
  %228 = vmatprep.subr.bf16.mxu0 0
  %229 = vmatpush1.bf16.xpose.msra.mxu0 0
  %230 = vmatprep.subr.bf16.mxu0 0
  %231 = vmatpush1.bf16.xpose.msra.mxu0 0
  %232 = vmatprep.subr.bf16.mxu0 0
  %233 = vmatpush1.bf16.xpose.msra.mxu0 0
  %234 = vmatprep.subr.bf16.mxu0 0
  %235 = vmatpush1.bf16.xpose.msra.mxu0 0
  %236 = vmatprep.subr.bf16.mxu0 0
  %237 = vmatpush1.bf16.xpose.msra.mxu0 0
  %238 = vmatprep.subr.bf16.mxu0 0
  %239 = vmatpush1.bf16.xpose.msra.mxu0 0
  %240 = vmatprep.mubr.bf16.mxu0 0
  %241 = vmatmul.mubr.bf16.gmra.mrb[0].mxu0 %v144
  %v242 = vpop.f32.mrb[0].mxu0
  %v243 = vadd.f32 %v110, %v242
  %v244 = vpop.f32.mrb[0].mxu0
  %v245 = vpop.f32.mrb[0].mxu0
  %v246 = vadd.f32 %v110, %v245
  %v247 = vpop.f32.mrb[0].mxu0
  %248 = vmatprep.mubr.bf16.mxu0 0
  %249 = vmatmul.mubr.bf16.gmra.mrb[0].mxu0 %v145
  %v250 = vpop.f32.mrb[0].mxu0
  %v251 = vadd.f32 %v110, %v250
  %v252 = vpop.f32.mrb[0].mxu0
  %v253 = vpop.f32.mrb[0].mxu0
  %v254 = vadd.f32 %v110, %v253
  %v255 = vpop.f32.mrb[0].mxu0
  %256 = vmatprep.mubr.bf16.mxu0 0
  %257 = vmatmul.mubr.bf16.gmra.mrb[0].mxu0 %v146
  %v258 = vpop.f32.mrb[0].mxu0
  %v259 = vadd.f32 %v110, %v258
  %v260 = vpop.f32.mrb[0].mxu0
  %v261 = vpop.f32.mrb[0].mxu0
  %v262 = vadd.f32 %v110, %v261
  %v263 = vpop.f32.mrb[0].mxu0
  %264 = vmatprep.mubr.bf16.mxu0 0
  %265 = vmatmul.mubr.bf16.gmra.mrb[0].mxu0 %v147
  %v266 = vpop.f32.mrb[0].mxu0
  %v267 = vadd.f32 %v110, %v266
  %v268 = vpop.f32.mrb[0].mxu0
  %v269 = vpop.f32.mrb[0].mxu0
  %v270 = vadd.f32 %v110, %v269
  %v271 = vpop.f32.mrb[0].mxu0
  %272 = vmatprep.mubr.bf16.mxu0 0
  %273 = vmatmul.mubr.bf16.gmra.mrb[0].mxu0 %v148
  %v274 = vpop.f32.mrb[0].mxu0
  %v275 = vadd.f32 %v110, %v274
  %v276 = vpop.f32.mrb[0].mxu0
  %v277 = vpop.f32.mrb[0].mxu0
  %v278 = vadd.f32 %v110, %v277
  %v279 = vpop.f32.mrb[0].mxu0
  %280 = vmatprep.mubr.bf16.mxu0 0
  %281 = vmatmul.mubr.bf16.gmra.mrb[0].mxu0 %v149
  %v282 = vpop.f32.mrb[0].mxu0
  %v283 = vadd.f32 %v110, %v282
  %v284 = vpop.f32.mrb[0].mxu0
  %v285 = vpop.f32.mrb[0].mxu0
  %v286 = vadd.f32 %v110, %v285
  %v287 = vpop.f32.mrb[0].mxu0
  %288 = vmatprep.mubr.bf16.mxu0 0
  %289 = vmatmul.mubr.bf16.gmra.mrb[0].mxu0 %v150
  %v290 = vpop.f32.mrb[0].mxu0
  %v291 = vadd.f32 %v110, %v290
  %v292 = vpop.f32.mrb[0].mxu0
  %v293 = vpop.f32.mrb[0].mxu0
  %v294 = vadd.f32 %v110, %v293
  %v295 = vpop.f32.mrb[0].mxu0
  %296 = vmatprep.mubr.bf16.mxu0 0
  %297 = vmatmul.mubr.bf16.gmra.mrb[0].mxu0 %v151
  %v298 = vpop.f32.mrb[0].mxu0
  %v299 = vadd.f32 %v110, %v298
  %v300 = vpop.f32.mrb[0].mxu0
  %v301 = vpop.f32.mrb[0].mxu0
  %v302 = vadd.f32 %v110, %v301
  %v303 = vpop.f32.mrb[0].mxu0
  %304 = vdwg.mxu0
  %v305 = vld [vmem:[#allocation2] sm:$0xff]
  %v306 = vld [vmem:[#allocation2 + $0x8] sm:$0xff]
  %v307 = vld [vmem:[#allocation2 + $0x10] sm:$0xff]
  %v308 = vld [vmem:[#allocation2 + $0x18] sm:$0xff]
  %v309 = vld [vmem:[#allocation2 + $0x20] sm:$0xff]
  %v310 = vld [vmem:[#allocation2 + $0x28] sm:$0xff]
  %v311 = vld [vmem:[#allocation2 + $0x30] sm:$0xff]
  %v312 = vld [vmem:[#allocation2 + $0x38] sm:$0xff]
  %v313 = vld [vmem:[#allocation2 + $0x40] sm:$0xff]
  %v314 = vld [vmem:[#allocation2 + $0x48] sm:$0xff]
  %v315 = vld [vmem:[#allocation2 + $0x50] sm:$0xff]
  %v316 = vld [vmem:[#allocation2 + $0x58] sm:$0xff]
  %v317 = vld [vmem:[#allocation2 + $0x60] sm:$0xff]
  %v318 = vld [vmem:[#allocation2 + $0x68] sm:$0xff]
  %v319 = vld [vmem:[#allocation2 + $0x70] sm:$0xff]
  %v320 = vld [vmem:[#allocation2 + $0x78] sm:$0xff]
  %321 = vmax.xlane.f32.xlu0 %v243
  %v322 = vpop.xlane.xlu0 %321
  %323 = vmax.xlane.f32.xlu0 %v246
  %v324 = vpop.xlane.xlu0 %323
  %325 = vmax.xlane.f32.xlu0 %v251
  %v326 = vpop.xlane.xlu0 %325
  %327 = vmax.xlane.f32.xlu0 %v254
  %v328 = vpop.xlane.xlu0 %327
  %329 = vmax.xlane.f32.xlu0 %v259
  %v330 = vpop.xlane.xlu0 %329
  %331 = vmax.xlane.f32.xlu0 %v262
  %v332 = vpop.xlane.xlu0 %331
  %333 = vmax.xlane.f32.xlu0 %v267
  %v334 = vpop.xlane.xlu0 %333
  %335 = vmax.xlane.f32.xlu0 %v270
  %v336 = vpop.xlane.xlu0 %335
  %337 = vmax.xlane.f32.xlu0 %v275
  %v338 = vpop.xlane.xlu0 %337
  %339 = vmax.xlane.f32.xlu0 %v278
  %v340 = vpop.xlane.xlu0 %339
  %341 = vmax.xlane.f32.xlu0 %v283
  %v342 = vpop.xlane.xlu0 %341
  %343 = vmax.xlane.f32.xlu0 %v286
  %v344 = vpop.xlane.xlu0 %343
  %345 = vmax.xlane.f32.xlu0 %v291
  %v346 = vpop.xlane.xlu0 %345
  %347 = vmax.xlane.f32.xlu0 %v294
  %v348 = vpop.xlane.xlu0 %347
  %349 = vmax.xlane.f32.xlu0 %v299
  %v350 = vpop.xlane.xlu0 %349
  %351 = vmax.xlane.f32.xlu0 %v302
  %v352 = vpop.xlane.xlu0 %351
  %v353 = vmax.f32 %v305, %v322
  %v354 = vmax.f32 %v306, %v324
  %v355 = vmax.f32 %v307, %v326
  %v356 = vmax.f32 %v308, %v328
  %v357 = vmax.f32 %v309, %v330
  %v358 = vmax.f32 %v310, %v332
  %v359 = vmax.f32 %v311, %v334
  %v360 = vmax.f32 %v312, %v336
  %v361 = vmax.f32 %v313, %v338
  %v362 = vmax.f32 %v314, %v340
  %v363 = vmax.f32 %v315, %v342
  %v364 = vmax.f32 %v316, %v344
  %v365 = vmax.f32 %v317, %v346
  %v366 = vmax.f32 %v318, %v348
  %v367 = vmax.f32 %v319, %v350
  %v368 = vmax.f32 %v320, %v352
  %v369 = vsub.f32 %v305, %v353
  %v370 = vsub.f32 %v306, %v354
  %v371 = vsub.f32 %v307, %v355
  %v372 = vsub.f32 %v308, %v356
  %v373 = vsub.f32 %v309, %v357
  %v374 = vsub.f32 %v310, %v358
  %v375 = vsub.f32 %v311, %v359
  %v376 = vsub.f32 %v312, %v360
  %v377 = vsub.f32 %v313, %v361
  %v378 = vsub.f32 %v314, %v362
  %v379 = vsub.f32 %v315, %v363
  %v380 = vsub.f32 %v316, %v364
  %v381 = vsub.f32 %v317, %v365
  %v382 = vsub.f32 %v318, %v366
  %v383 = vsub.f32 %v319, %v367
  %v384 = vsub.f32 %v320, %v368
  %v385 = vmul.f32 %v369, 1.442695
  %v386 = vpow.pop %v385
  %v387 = vmul.f32 %v370, 1.442695
  %v388 = vpow.pop %v387
  %v389 = vmul.f32 %v371, 1.442695
  %v390 = vpow.pop %v389
  %v391 = vmul.f32 %v372, 1.442695
  %v392 = vpow.pop %v391
  %v393 = vmul.f32 %v373, 1.442695
  %v394 = vpow.pop %v393
  %v395 = vmul.f32 %v374, 1.442695
  %v396 = vpow.pop %v395
  %v397 = vmul.f32 %v375, 1.442695
  %v398 = vpow.pop %v397
  %v399 = vmul.f32 %v376, 1.442695
  %v400 = vpow.pop %v399
  %v401 = vmul.f32 %v377, 1.442695
  %v402 = vpow.pop %v401
  %v403 = vmul.f32 %v378, 1.442695
  %v404 = vpow.pop %v403
  %v405 = vmul.f32 %v379, 1.442695
  %v406 = vpow.pop %v405
  %v407 = vmul.f32 %v380, 1.442695
  %v408 = vpow.pop %v407
  %v409 = vmul.f32 %v381, 1.442695
  %v410 = vpow.pop %v409
  %v411 = vmul.f32 %v382, 1.442695
  %v412 = vpow.pop %v411
  %v413 = vmul.f32 %v383, 1.442695
  %v414 = vpow.pop %v413
  %v415 = vmul.f32 %v384, 1.442695
  %v416 = vpow.pop %v415
  %418 = vset.pattern.permute.xlu0 0
  %419 = vperm.xlu0 %418, %v353
  %v420 = vpop.permute.xlu0 %419
  %423 = vset.pattern.permute.xlu0 0
  %424 = vperm.xlu0 %423, %v354
  %v425 = vpop.permute.xlu0 %424
  %428 = vset.pattern.permute.xlu0 0
  %429 = vperm.xlu0 %428, %v355
  %v430 = vpop.permute.xlu0 %429
  %433 = vset.pattern.permute.xlu0 0
  %434 = vperm.xlu0 %433, %v356
  %v435 = vpop.permute.xlu0 %434
  %438 = vset.pattern.permute.xlu0 0
  %439 = vperm.xlu0 %438, %v357
  %v440 = vpop.permute.xlu0 %439
  %443 = vset.pattern.permute.xlu0 0
  %444 = vperm.xlu0 %443, %v358
  %v445 = vpop.permute.xlu0 %444
  %448 = vset.pattern.permute.xlu0 0
  %449 = vperm.xlu0 %448, %v359
  %v450 = vpop.permute.xlu0 %449
  %453 = vset.pattern.permute.xlu0 0
  %454 = vperm.xlu0 %453, %v360
  %v455 = vpop.permute.xlu0 %454
  %458 = vset.pattern.permute.xlu0 0
  %459 = vperm.xlu0 %458, %v361
  %v460 = vpop.permute.xlu0 %459
  %463 = vset.pattern.permute.xlu0 0
  %464 = vperm.xlu0 %463, %v362
  %v465 = vpop.permute.xlu0 %464
  %468 = vset.pattern.permute.xlu0 0
  %469 = vperm.xlu0 %468, %v363
  %v470 = vpop.permute.xlu0 %469
  %473 = vset.pattern.permute.xlu0 0
  %474 = vperm.xlu0 %473, %v364
  %v475 = vpop.permute.xlu0 %474
  %478 = vset.pattern.permute.xlu0 0
  %479 = vperm.xlu0 %478, %v365
  %v480 = vpop.permute.xlu0 %479
  %483 = vset.pattern.permute.xlu0 0
  %484 = vperm.xlu0 %483, %v366
  %v485 = vpop.permute.xlu0 %484
  %488 = vset.pattern.permute.xlu0 0
  %489 = vperm.xlu0 %488, %v367
  %v490 = vpop.permute.xlu0 %489
  %493 = vset.pattern.permute.xlu0 0
  %494 = vperm.xlu0 %493, %v368
  %v495 = vpop.permute.xlu0 %494
  %v497 = vsub.f32 %v243, %v420
  %v498 = vsub.f32 %v246, %v425
  %v499 = vsub.f32 %v251, %v430
  %v500 = vsub.f32 %v254, %v435
  %v501 = vsub.f32 %v259, %v440
  %v502 = vsub.f32 %v262, %v445
  %v503 = vsub.f32 %v267, %v450
  %v504 = vsub.f32 %v270, %v455
  %v505 = vsub.f32 %v275, %v460
  %v506 = vsub.f32 %v278, %v465
  %v507 = vsub.f32 %v283, %v470
  %v508 = vsub.f32 %v286, %v475
  %v509 = vsub.f32 %v291, %v480
  %v510 = vsub.f32 %v294, %v485
  %v511 = vsub.f32 %v299, %v490
  %v512 = vsub.f32 %v302, %v495
  %v513 = vmul.f32 %v497, 1.442695
  %v514 = vpow.pop %v513
  %v515 = vmul.f32 %v498, 1.442695
  %v516 = vpow.pop %v515
  %v517 = vmul.f32 %v499, 1.442695
  %v518 = vpow.pop %v517
  %v519 = vmul.f32 %v500, 1.442695
  %v520 = vpow.pop %v519
  %v521 = vmul.f32 %v501, 1.442695
  %v522 = vpow.pop %v521
  %v523 = vmul.f32 %v502, 1.442695
  %v524 = vpow.pop %v523
  %v525 = vmul.f32 %v503, 1.442695
  %v526 = vpow.pop %v525
  %v527 = vmul.f32 %v504, 1.442695
  %v528 = vpow.pop %v527
  %v529 = vmul.f32 %v505, 1.442695
  %v530 = vpow.pop %v529
  %v531 = vmul.f32 %v506, 1.442695
  %v532 = vpow.pop %v531
  %v533 = vmul.f32 %v507, 1.442695
  %v534 = vpow.pop %v533
  %v535 = vmul.f32 %v508, 1.442695
  %v536 = vpow.pop %v535
  %v537 = vmul.f32 %v509, 1.442695
  %v538 = vpow.pop %v537
  %v539 = vmul.f32 %v510, 1.442695
  %v540 = vpow.pop %v539
  %v541 = vmul.f32 %v511, 1.442695
  %v542 = vpow.pop %v541
  %v543 = vmul.f32 %v512, 1.442695
  %v544 = vpow.pop %v543
  %v545 = vld [vmem:[#allocation3] sm:$0xff]
  %v546 = vld [vmem:[#allocation3 + $0x8] sm:$0xff]
  %v547 = vld [vmem:[#allocation3 + $0x10] sm:$0xff]
  %v548 = vld [vmem:[#allocation3 + $0x18] sm:$0xff]
  %v549 = vld [vmem:[#allocation3 + $0x20] sm:$0xff]
  %v550 = vld [vmem:[#allocation3 + $0x28] sm:$0xff]
  %v551 = vld [vmem:[#allocation3 + $0x30] sm:$0xff]
  %v552 = vld [vmem:[#allocation3 + $0x38] sm:$0xff]
  %v553 = vld [vmem:[#allocation3 + $0x40] sm:$0xff]
  %v554 = vld [vmem:[#allocation3 + $0x48] sm:$0xff]
  %v555 = vld [vmem:[#allocation3 + $0x50] sm:$0xff]
  %v556 = vld [vmem:[#allocation3 + $0x58] sm:$0xff]
  %v557 = vld [vmem:[#allocation3 + $0x60] sm:$0xff]
  %v558 = vld [vmem:[#allocation3 + $0x68] sm:$0xff]
  %v559 = vld [vmem:[#allocation3 + $0x70] sm:$0xff]
  %v560 = vld [vmem:[#allocation3 + $0x78] sm:$0xff]
  %v561 = vmul.f32 %v386, %v545
  %v562 = vmul.f32 %v388, %v546
  %v563 = vmul.f32 %v390, %v547
  %v564 = vmul.f32 %v392, %v548
  %v565 = vmul.f32 %v394, %v549
  %v566 = vmul.f32 %v396, %v550
  %v567 = vmul.f32 %v398, %v551
  %v568 = vmul.f32 %v400, %v552
  %v569 = vmul.f32 %v402, %v553
  %v570 = vmul.f32 %v404, %v554
  %v571 = vmul.f32 %v406, %v555
  %v572 = vmul.f32 %v408, %v556
  %v573 = vmul.f32 %v410, %v557
  %v574 = vmul.f32 %v412, %v558
  %v575 = vmul.f32 %v414, %v559
  %v576 = vmul.f32 %v416, %v560
  %577 = vadd.xlane.f32.xlu0 %v514
  %v578 = vpop.xlane.xlu0 %577
  %579 = vadd.xlane.f32.xlu0 %v516
  %v580 = vpop.xlane.xlu0 %579
  %581 = vadd.xlane.f32.xlu0 %v518
  %v582 = vpop.xlane.xlu0 %581
  %583 = vadd.xlane.f32.xlu0 %v520
  %v584 = vpop.xlane.xlu0 %583
  %585 = vadd.xlane.f32.xlu0 %v522
  %v586 = vpop.xlane.xlu0 %585
  %587 = vadd.xlane.f32.xlu0 %v524
  %v588 = vpop.xlane.xlu0 %587
  %589 = vadd.xlane.f32.xlu0 %v526
  %v590 = vpop.xlane.xlu0 %589
  %591 = vadd.xlane.f32.xlu0 %v528
  %v592 = vpop.xlane.xlu0 %591
  %593 = vadd.xlane.f32.xlu0 %v530
  %v594 = vpop.xlane.xlu0 %593
  %595 = vadd.xlane.f32.xlu0 %v532
  %v596 = vpop.xlane.xlu0 %595
  %597 = vadd.xlane.f32.xlu0 %v534
  %v598 = vpop.xlane.xlu0 %597
  %599 = vadd.xlane.f32.xlu0 %v536
  %v600 = vpop.xlane.xlu0 %599
  %601 = vadd.xlane.f32.xlu0 %v538
  %v602 = vpop.xlane.xlu0 %601
  %603 = vadd.xlane.f32.xlu0 %v540
  %v604 = vpop.xlane.xlu0 %603
  %605 = vadd.xlane.f32.xlu0 %v542
  %v606 = vpop.xlane.xlu0 %605
  %607 = vadd.xlane.f32.xlu0 %v544
  %v608 = vpop.xlane.xlu0 %607
  %v609 = vadd.f32 %v561, %v578
  %v610 = vadd.f32 %v562, %v580
  %v611 = vadd.f32 %v563, %v582
  %v612 = vadd.f32 %v564, %v584
  %v613 = vadd.f32 %v565, %v586
  %v614 = vadd.f32 %v566, %v588
  %v615 = vadd.f32 %v567, %v590
  %v616 = vadd.f32 %v568, %v592
  %v617 = vadd.f32 %v569, %v594
  %v618 = vadd.f32 %v570, %v596
  %v619 = vadd.f32 %v571, %v598
  %v620 = vadd.f32 %v572, %v600
  %v621 = vadd.f32 %v573, %v602
  %v622 = vadd.f32 %v574, %v604
  %v623 = vadd.f32 %v575, %v606
  %v624 = vadd.f32 %v576, %v608
  %vm625 = vcmask 7168
  %626 = vst.msk [vmem:[#allocation3] sm:$0xff] %vm625, %v609
  %627 = vst.msk [vmem:[#allocation3 + $0x8] sm:$0xff] %vm625, %v610
  %628 = vst.msk [vmem:[#allocation3 + $0x10] sm:$0xff] %vm625, %v611
  %629 = vst.msk [vmem:[#allocation3 + $0x18] sm:$0xff] %vm625, %v612
  %630 = vst.msk [vmem:[#allocation3 + $0x20] sm:$0xff] %vm625, %v613
  %631 = vst.msk [vmem:[#allocation3 + $0x28] sm:$0xff] %vm625, %v614
  %632 = vst.msk [vmem:[#allocation3 + $0x30] sm:$0xff] %vm625, %v615
  %633 = vst.msk [vmem:[#allocation3 + $0x38] sm:$0xff] %vm625, %v616
  %634 = vst.msk [vmem:[#allocation3 + $0x40] sm:$0xff] %vm625, %v617
  %635 = vst.msk [vmem:[#allocation3 + $0x48] sm:$0xff] %vm625, %v618
  %636 = vst.msk [vmem:[#allocation3 + $0x50] sm:$0xff] %vm625, %v619
  %637 = vst.msk [vmem:[#allocation3 + $0x58] sm:$0xff] %vm625, %v620
  %638 = vst.msk [vmem:[#allocation3 + $0x60] sm:$0xff] %vm625, %v621
  %639 = vst.msk [vmem:[#allocation3 + $0x68] sm:$0xff] %vm625, %v622
  %640 = vst.msk [vmem:[#allocation3 + $0x70] sm:$0xff] %vm625, %v623
  %641 = vst.msk [vmem:[#allocation3 + $0x78] sm:$0xff] %vm625, %v624
  %v642 = vld [vmem:[#allocation4] sm:$0xff]
  %v643 = vld [vmem:[#allocation4 + $0x8] sm:$0xff]
  %v644 = vld [vmem:[#allocation4 + $0x10] sm:$0xff]
  %v645 = vld [vmem:[#allocation4 + $0x18] sm:$0xff]
  %v646 = vld [vmem:[#allocation4 + $0x20] sm:$0xff]
  %v647 = vld [vmem:[#allocation4 + $0x28] sm:$0xff]
  %v648 = vld [vmem:[#allocation4 + $0x30] sm:$0xff]
  %v649 = vld [vmem:[#allocation4 + $0x38] sm:$0xff]
  %v650 = vld [vmem:[#allocation4 + $0x40] sm:$0xff]
  %v651 = vld [vmem:[#allocation4 + $0x48] sm:$0xff]
  %v652 = vld [vmem:[#allocation4 + $0x50] sm:$0xff]
  %v653 = vld [vmem:[#allocation4 + $0x58] sm:$0xff]
  %v654 = vld [vmem:[#allocation4 + $0x60] sm:$0xff]
  %v655 = vld [vmem:[#allocation4 + $0x68] sm:$0xff]
  %v656 = vld [vmem:[#allocation4 + $0x70] sm:$0xff]
  %v657 = vld [vmem:[#allocation4 + $0x78] sm:$0xff]
  %659 = vset.pattern.permute.xlu0 0
  %660 = vperm.xlu0 %659, %v386
  %v661 = vpop.permute.xlu0 %660
  %664 = vset.pattern.permute.xlu0 0
  %665 = vperm.xlu0 %664, %v388
  %v666 = vpop.permute.xlu0 %665
  %669 = vset.pattern.permute.xlu0 0
  %670 = vperm.xlu0 %669, %v390
  %v671 = vpop.permute.xlu0 %670
  %674 = vset.pattern.permute.xlu0 0
  %675 = vperm.xlu0 %674, %v392
  %v676 = vpop.permute.xlu0 %675
  %679 = vset.pattern.permute.xlu0 0
  %680 = vperm.xlu0 %679, %v394
  %v681 = vpop.permute.xlu0 %680
  %684 = vset.pattern.permute.xlu0 0
  %685 = vperm.xlu0 %684, %v396
  %v686 = vpop.permute.xlu0 %685
  %689 = vset.pattern.permute.xlu0 0
  %690 = vperm.xlu0 %689, %v398
  %v691 = vpop.permute.xlu0 %690
  %694 = vset.pattern.permute.xlu0 0
  %695 = vperm.xlu0 %694, %v400
  %v696 = vpop.permute.xlu0 %695
  %699 = vset.pattern.permute.xlu0 0
  %700 = vperm.xlu0 %699, %v402
  %v701 = vpop.permute.xlu0 %700
  %704 = vset.pattern.permute.xlu0 0
  %705 = vperm.xlu0 %704, %v404
  %v706 = vpop.permute.xlu0 %705
  %709 = vset.pattern.permute.xlu0 0
  %710 = vperm.xlu0 %709, %v406
  %v711 = vpop.permute.xlu0 %710
  %714 = vset.pattern.permute.xlu0 0
  %715 = vperm.xlu0 %714, %v408
  %v716 = vpop.permute.xlu0 %715
  %719 = vset.pattern.permute.xlu0 0
  %720 = vperm.xlu0 %719, %v410
  %v721 = vpop.permute.xlu0 %720
  %724 = vset.pattern.permute.xlu0 0
  %725 = vperm.xlu0 %724, %v412
  %v726 = vpop.permute.xlu0 %725
  %729 = vset.pattern.permute.xlu0 0
  %730 = vperm.xlu0 %729, %v414
  %v731 = vpop.permute.xlu0 %730
  %734 = vset.pattern.permute.xlu0 0
  %735 = vperm.xlu0 %734, %v416
  %v736 = vpop.permute.xlu0 %735
  %v738 = vmul.f32 %v661, %v642
  %v739 = vmul.f32 %v666, %v643
  %v740 = vmul.f32 %v671, %v644
  %v741 = vmul.f32 %v676, %v645
  %v742 = vmul.f32 %v681, %v646
  %v743 = vmul.f32 %v686, %v647
  %v744 = vmul.f32 %v691, %v648
  %v745 = vmul.f32 %v696, %v649
  %v746 = vmul.f32 %v701, %v650
  %v747 = vmul.f32 %v706, %v651
  %v748 = vmul.f32 %v711, %v652
  %v749 = vmul.f32 %v716, %v653
  %v750 = vmul.f32 %v721, %v654
  %v751 = vmul.f32 %v726, %v655
  %v752 = vmul.f32 %v731, %v656
  %v753 = vmul.f32 %v736, %v657
  %v754 = vpack.c.bf16 %v516, %v514
  %v755 = vpack.c.bf16 %v520, %v518
  %v756 = vpack.c.bf16 %v524, %v522
  %v757 = vpack.c.bf16 %v528, %v526
  %v758 = vpack.c.bf16 %v532, %v530
  %v759 = vpack.c.bf16 %v536, %v534
  %v760 = vpack.c.bf16 %v540, %v538
  %v761 = vpack.c.bf16 %v544, %v542
  %v762 = vld [vmem:[%s2] sm:$0xf]
  %v763 = vld [vmem:[%s2 + $0x4] sm:$0xf]
  %v764 = vld [vmem:[%s2 + $0x8] sm:$0xf]
  %v765 = vld [vmem:[%s2 + $0xc] sm:$0xf]
  %v766 = vld [vmem:[%s2 + $0x10] sm:$0xf]
  %v767 = vld [vmem:[%s2 + $0x14] sm:$0xf]
  %v768 = vld [vmem:[%s2 + $0x18] sm:$0xf]
  %v769 = vld [vmem:[%s2 + $0x1c] sm:$0xf]
  %v770 = vld [vmem:[%s2 + $0x20] sm:$0xf]
  %v771 = vld [vmem:[%s2 + $0x24] sm:$0xf]
  %v772 = vld [vmem:[%s2 + $0x28] sm:$0xf]
  %v773 = vld [vmem:[%s2 + $0x2c] sm:$0xf]
  %v774 = vld [vmem:[%s2 + $0x30] sm:$0xf]
  %v775 = vld [vmem:[%s2 + $0x34] sm:$0xf]
  %v776 = vld [vmem:[%s2 + $0x38] sm:$0xf]
  %v777 = vld [vmem:[%s2 + $0x3c] sm:$0xf]
  %v794 = vunpack.c.l.b16 %v762
  %v795 = vunpack.c.l.b16 %v763
  %v796 = vunpack.c.l.b16 %v764
  %v797 = vunpack.c.l.b16 %v765
  %v798 = vunpack.c.l.b16 %v766
  %v799 = vunpack.c.l.b16 %v767
  %v800 = vunpack.c.l.b16 %v768
  %v801 = vunpack.c.l.b16 %v769
  %v802 = vunpack.c.l.b16 %v770
  %v803 = vunpack.c.l.b16 %v771
  %v804 = vunpack.c.l.b16 %v772
  %v805 = vunpack.c.l.b16 %v773
  %v806 = vunpack.c.l.b16 %v774
  %v807 = vunpack.c.l.b16 %v775
  %v808 = vunpack.c.l.b16 %v776
  %v809 = vunpack.c.l.b16 %v777
  %v810 = vpack.c.b16 %v795, %v794
  %v811 = vpack.c.b16 %v797, %v796
  %v812 = vpack.c.b16 %v799, %v798
  %v813 = vpack.c.b16 %v801, %v800
  %v814 = vpack.c.b16 %v803, %v802
  %v815 = vpack.c.b16 %v805, %v804
  %v816 = vpack.c.b16 %v807, %v806
  %v817 = vpack.c.b16 %v809, %v808
  %826 = vmatprep.subr.bf16.mxu0 0
  %827 = vmatpush1.bf16.msra.mxu0 %v810
  %828 = vmatprep.subr.bf16.mxu0 0
  %829 = vmatpush1.bf16.msra.mxu0 %v811
  %830 = vmatprep.subr.bf16.mxu0 0
  %831 = vmatpush1.bf16.msra.mxu0 %v812
  %832 = vmatprep.subr.bf16.mxu0 0
  %833 = vmatpush1.bf16.msra.mxu0 %v813
  %834 = vmatprep.subr.bf16.mxu0 0
  %835 = vmatpush1.bf16.msra.mxu0 %v814
  %836 = vmatprep.subr.bf16.mxu0 0
  %837 = vmatpush1.bf16.msra.mxu0 %v815
  %838 = vmatprep.subr.bf16.mxu0 0
  %839 = vmatpush1.bf16.msra.mxu0 %v816
  %840 = vmatprep.subr.bf16.mxu0 0
  %841 = vmatpush1.bf16.msra.mxu0 %v817
  %842 = vmatprep.subr.bf16.mxu0 0
  %843 = vmatpush1.bf16.msra.mxu0 0
  %844 = vmatprep.subr.bf16.mxu0 0
  %845 = vmatpush1.bf16.msra.mxu0 0
  %846 = vmatprep.subr.bf16.mxu0 0
  %847 = vmatpush1.bf16.msra.mxu0 0
  %848 = vmatprep.subr.bf16.mxu0 0
  %849 = vmatpush1.bf16.msra.mxu0 0
  %850 = vmatprep.subr.bf16.mxu0 0
  %851 = vmatpush1.bf16.msra.mxu0 0
  %852 = vmatprep.subr.bf16.mxu0 0
  %853 = vmatpush1.bf16.msra.mxu0 0
  %854 = vmatprep.subr.bf16.mxu0 0
  %855 = vmatpush1.bf16.msra.mxu0 0
  %856 = vmatprep.subr.bf16.mxu0 0
  %857 = vmatpush1.bf16.msra.mxu0 0
  %858 = vmatprep.mubr.bf16.mxu0 0
  %859 = vmatmul.mubr.bf16.gmra.mrb[0].mxu0 %v754
  %v860 = vpop.f32.mrb[0].mxu0
  %v861 = vadd.f32 0.0, %v860
  %v862 = vpop.f32.mrb[0].mxu0
  %v863 = vpop.f32.mrb[0].mxu0
  %v864 = vadd.f32 0.0, %v863
  %v865 = vpop.f32.mrb[0].mxu0
  %866 = vmatprep.mubr.bf16.mxu0 0
  %867 = vmatmul.mubr.bf16.gmra.mrb[0].mxu0 %v755
  %v868 = vpop.f32.mrb[0].mxu0
  %v869 = vadd.f32 0.0, %v868
  %v870 = vpop.f32.mrb[0].mxu0
  %v871 = vpop.f32.mrb[0].mxu0
  %v872 = vadd.f32 0.0, %v871
  %v873 = vpop.f32.mrb[0].mxu0
  %874 = vmatprep.mubr.bf16.mxu0 0
  %875 = vmatmul.mubr.bf16.gmra.mrb[0].mxu0 %v756
  %v876 = vpop.f32.mrb[0].mxu0
  %v877 = vadd.f32 0.0, %v876
  %v878 = vpop.f32.mrb[0].mxu0
  %v879 = vpop.f32.mrb[0].mxu0
  %v880 = vadd.f32 0.0, %v879
  %v881 = vpop.f32.mrb[0].mxu0
  %882 = vmatprep.mubr.bf16.mxu0 0
  %883 = vmatmul.mubr.bf16.gmra.mrb[0].mxu0 %v757
  %v884 = vpop.f32.mrb[0].mxu0
  %v885 = vadd.f32 0.0, %v884
  %v886 = vpop.f32.mrb[0].mxu0
  %v887 = vpop.f32.mrb[0].mxu0
  %v888 = vadd.f32 0.0, %v887
  %v889 = vpop.f32.mrb[0].mxu0
  %890 = vmatprep.mubr.bf16.mxu0 0
  %891 = vmatmul.mubr.bf16.gmra.mrb[0].mxu0 %v758
  %v892 = vpop.f32.mrb[0].mxu0
  %v893 = vadd.f32 0.0, %v892
  %v894 = vpop.f32.mrb[0].mxu0
  %v895 = vpop.f32.mrb[0].mxu0
  %v896 = vadd.f32 0.0, %v895
  %v897 = vpop.f32.mrb[0].mxu0
  %898 = vmatprep.mubr.bf16.mxu0 0
  %899 = vmatmul.mubr.bf16.gmra.mrb[0].mxu0 %v759
  %v900 = vpop.f32.mrb[0].mxu0
  %v901 = vadd.f32 0.0, %v900
  %v902 = vpop.f32.mrb[0].mxu0
  %v903 = vpop.f32.mrb[0].mxu0
  %v904 = vadd.f32 0.0, %v903
  %v905 = vpop.f32.mrb[0].mxu0
  %906 = vmatprep.mubr.bf16.mxu0 0
  %907 = vmatmul.mubr.bf16.gmra.mrb[0].mxu0 %v760
  %v908 = vpop.f32.mrb[0].mxu0
  %v909 = vadd.f32 0.0, %v908
  %v910 = vpop.f32.mrb[0].mxu0
  %v911 = vpop.f32.mrb[0].mxu0
  %v912 = vadd.f32 0.0, %v911
  %v913 = vpop.f32.mrb[0].mxu0
  %914 = vmatprep.mubr.bf16.mxu0 0
  %915 = vmatmul.mubr.bf16.gmra.mrb[0].mxu0 %v761
  %v916 = vpop.f32.mrb[0].mxu0
  %v917 = vadd.f32 0.0, %v916
  %v918 = vpop.f32.mrb[0].mxu0
  %v919 = vpop.f32.mrb[0].mxu0
  %v920 = vadd.f32 0.0, %v919
  %v921 = vpop.f32.mrb[0].mxu0
  %922 = vdwg.mxu0
  %v923 = vadd.f32 %v738, %v861
  %v924 = vadd.f32 %v739, %v864
  %v925 = vadd.f32 %v740, %v869
  %v926 = vadd.f32 %v741, %v872
  %v927 = vadd.f32 %v742, %v877
  %v928 = vadd.f32 %v743, %v880
  %v929 = vadd.f32 %v744, %v885
  %v930 = vadd.f32 %v745, %v888
  %v931 = vadd.f32 %v746, %v893
  %v932 = vadd.f32 %v747, %v896
  %v933 = vadd.f32 %v748, %v901
  %v934 = vadd.f32 %v749, %v904
  %v935 = vadd.f32 %v750, %v909
  %v936 = vadd.f32 %v751, %v912
  %v937 = vadd.f32 %v752, %v917
  %v938 = vadd.f32 %v753, %v920
  %939 = vst [vmem:[#allocation4] sm:$0xff] %v923
  %940 = vst [vmem:[#allocation4 + $0x8] sm:$0xff] %v924
  %941 = vst [vmem:[#allocation4 + $0x10] sm:$0xff] %v925
  %942 = vst [vmem:[#allocation4 + $0x18] sm:$0xff] %v926
  %943 = vst [vmem:[#allocation4 + $0x20] sm:$0xff] %v927
  %944 = vst [vmem:[#allocation4 + $0x28] sm:$0xff] %v928
  %945 = vst [vmem:[#allocation4 + $0x30] sm:$0xff] %v929
  %946 = vst [vmem:[#allocation4 + $0x38] sm:$0xff] %v930
  %947 = vst [vmem:[#allocation4 + $0x40] sm:$0xff] %v931
  %948 = vst [vmem:[#allocation4 + $0x48] sm:$0xff] %v932
  %949 = vst [vmem:[#allocation4 + $0x50] sm:$0xff] %v933
  %950 = vst [vmem:[#allocation4 + $0x58] sm:$0xff] %v934
  %951 = vst [vmem:[#allocation4 + $0x60] sm:$0xff] %v935
  %952 = vst [vmem:[#allocation4 + $0x68] sm:$0xff] %v936
  %953 = vst [vmem:[#allocation4 + $0x70] sm:$0xff] %v937
  %954 = vst [vmem:[#allocation4 + $0x78] sm:$0xff] %v938
  %955 = vst.msk [vmem:[#allocation2] sm:$0xff] %vm625, %v353
  %956 = vst.msk [vmem:[#allocation2 + $0x8] sm:$0xff] %vm625, %v354
  %957 = vst.msk [vmem:[#allocation2 + $0x10] sm:$0xff] %vm625, %v355
  %958 = vst.msk [vmem:[#allocation2 + $0x18] sm:$0xff] %vm625, %v356
  %959 = vst.msk [vmem:[#allocation2 + $0x20] sm:$0xff] %vm625, %v357
  %960 = vst.msk [vmem:[#allocation2 + $0x28] sm:$0xff] %vm625, %v358
  %961 = vst.msk [vmem:[#allocation2 + $0x30] sm:$0xff] %vm625, %v359
  %962 = vst.msk [vmem:[#allocation2 + $0x38] sm:$0xff] %vm625, %v360
  %963 = vst.msk [vmem:[#allocation2 + $0x40] sm:$0xff] %vm625, %v361
  %964 = vst.msk [vmem:[#allocation2 + $0x48] sm:$0xff] %vm625, %v362
  %965 = vst.msk [vmem:[#allocation2 + $0x50] sm:$0xff] %vm625, %v363
  %966 = vst.msk [vmem:[#allocation2 + $0x58] sm:$0xff] %vm625, %v364
  %967 = vst.msk [vmem:[#allocation2 + $0x60] sm:$0xff] %vm625, %v365
  %968 = vst.msk [vmem:[#allocation2 + $0x68] sm:$0xff] %vm625, %v366
  %969 = vst.msk [vmem:[#allocation2 + $0x70] sm:$0xff] %vm625, %v367
  %970 = vst.msk [vmem:[#allocation2 + $0x78] sm:$0xff] %vm625, %v368
  %s971 = smul.u32 0, 128
  %s972 = scalar_lea.vmem [#allocation5], %s971
  %973 = vst.msk [vmem:[%s972] sm:$0xff] %vm625, %v353
  %974 = vst.msk [vmem:[%s972 + $0x8] sm:$0xff] %vm625, %v354
  %975 = vst.msk [vmem:[%s972 + $0x10] sm:$0xff] %vm625, %v355
  %976 = vst.msk [vmem:[%s972 + $0x18] sm:$0xff] %vm625, %v356
  %977 = vst.msk [vmem:[%s972 + $0x20] sm:$0xff] %vm625, %v357
  %978 = vst.msk [vmem:[%s972 + $0x28] sm:$0xff] %vm625, %v358
  %979 = vst.msk [vmem:[%s972 + $0x30] sm:$0xff] %vm625, %v359
  %980 = vst.msk [vmem:[%s972 + $0x38] sm:$0xff] %vm625, %v360
  %981 = vst.msk [vmem:[%s972 + $0x40] sm:$0xff] %vm625, %v361
  %982 = vst.msk [vmem:[%s972 + $0x48] sm:$0xff] %vm625, %v362
  %983 = vst.msk [vmem:[%s972 + $0x50] sm:$0xff] %vm625, %v363
  %984 = vst.msk [vmem:[%s972 + $0x58] sm:$0xff] %vm625, %v364
  %985 = vst.msk [vmem:[%s972 + $0x60] sm:$0xff] %vm625, %v365
  %986 = vst.msk [vmem:[%s972 + $0x68] sm:$0xff] %vm625, %v366
  %987 = vst.msk [vmem:[%s972 + $0x70] sm:$0xff] %vm625, %v367
  %988 = vst.msk [vmem:[%s972 + $0x78] sm:$0xff] %vm625, %v368
  %v997 = vunpack.c.l.b16 %v754
  %v998 = vunpack.c.h.b16 %v754
  %v999 = vunpack.c.l.b16 %v755
  %v1000 = vunpack.c.h.b16 %v755
  %v1001 = vunpack.c.l.b16 %v756
  %v1002 = vunpack.c.h.b16 %v756
  %v1003 = vunpack.c.l.b16 %v757
  %v1004 = vunpack.c.h.b16 %v757
  %v1005 = vunpack.c.l.b16 %v758
  %v1006 = vunpack.c.h.b16 %v758
  %v1007 = vunpack.c.l.b16 %v759
  %v1008 = vunpack.c.h.b16 %v759
  %v1009 = vunpack.c.l.b16 %v760
  %v1010 = vunpack.c.h.b16 %v760
  %v1011 = vunpack.c.l.b16 %v761
  %v1012 = vunpack.c.h.b16 %v761
  %v1013 = vpack.c.b16 %v997, %v997
  %v1014 = vpack.c.b16 %v998, %v998
  %v1015 = vpack.c.b16 %v999, %v999
  %v1016 = vpack.c.b16 %v1000, %v1000
  %v1017 = vpack.c.b16 %v1001, %v1001
  %v1018 = vpack.c.b16 %v1002, %v1002
  %v1019 = vpack.c.b16 %v1003, %v1003
  %v1020 = vpack.c.b16 %v1004, %v1004
  %v1021 = vpack.c.b16 %v1005, %v1005
  %v1022 = vpack.c.b16 %v1006, %v1006
  %v1023 = vpack.c.b16 %v1007, %v1007
  %v1024 = vpack.c.b16 %v1008, %v1008
  %v1025 = vpack.c.b16 %v1009, %v1009
  %v1026 = vpack.c.b16 %v1010, %v1010
  %v1027 = vpack.c.b16 %v1011, %v1011
  %v1028 = vpack.c.b16 %v1012, %v1012
  %s1045 = sshra.s32 %s971, 7
  %s1046 = sand.u32 %s971, 127
  %s1047 = smul.addr %s1045, 4
  %s1048 = scalar_lea.vmem %s4, %s1047
  %1049 = vst [vmem:[%s1048] sm:$0xf] %v1013
  %1050 = vst [vmem:[%s1048 + $0x4] sm:$0xf] %v1014
  %1051 = vst [vmem:[%s1048 + $0x8] sm:$0xf] %v1015
  %1052 = vst [vmem:[%s1048 + $0xc] sm:$0xf] %v1016
  %1053 = vst [vmem:[%s1048 + $0x10] sm:$0xf] %v1017
  %1054 = vst [vmem:[%s1048 + $0x14] sm:$0xf] %v1018
  %1055 = vst [vmem:[%s1048 + $0x18] sm:$0xf] %v1019
  %1056 = vst [vmem:[%s1048 + $0x1c] sm:$0xf] %v1020
  %1057 = vst [vmem:[%s1048 + $0x20] sm:$0xf] %v1021
  %1058 = vst [vmem:[%s1048 + $0x24] sm:$0xf] %v1022
  %1059 = vst [vmem:[%s1048 + $0x28] sm:$0xf] %v1023
  %1060 = vst [vmem:[%s1048 + $0x2c] sm:$0xf] %v1024
  %1061 = vst [vmem:[%s1048 + $0x30] sm:$0xf] %v1025
  %1062 = vst [vmem:[%s1048 + $0x34] sm:$0xf] %v1026
  %1063 = vst [vmem:[%s1048 + $0x38] sm:$0xf] %v1027
  %1064 = vst [vmem:[%s1048 + $0x3c] sm:$0xf] %v1028
  // Predicated region
  $region22: #{self_attention.1} parent=0 // pred_check
    %p1065 = pneg %p20
  $region23: #{self_attention.1} parent=0 // pred_check_branch
    %1067 = sbr.rel (%p1065) target = $region25
  $region24: #{self_attention.1} parent=0 // pred_region
    %v1068 = vld [vmem:[#allocation2] sm:$0xff]
    %v1069 = vld [vmem:[#allocation2 + $0x8] sm:$0xff]
    %v1070 = vld [vmem:[#allocation2 + $0x10] sm:$0xff]
    %v1071 = vld [vmem:[#allocation2 + $0x18] sm:$0xff]
    %v1072 = vld [vmem:[#allocation2 + $0x20] sm:$0xff]
    %v1073 = vld [vmem:[#allocation2 + $0x28] sm:$0xff]
    %v1074 = vld [vmem:[#allocation2 + $0x30] sm:$0xff]
    %v1075 = vld [vmem:[#allocation2 + $0x38] sm:$0xff]
    %v1076 = vld [vmem:[#allocation2 + $0x40] sm:$0xff]
    %v1077 = vld [vmem:[#allocation2 + $0x48] sm:$0xff]
    %v1078 = vld [vmem:[#allocation2 + $0x50] sm:$0xff]
    %v1079 = vld [vmem:[#allocation2 + $0x58] sm:$0xff]
    %v1080 = vld [vmem:[#allocation2 + $0x60] sm:$0xff]
    %v1081 = vld [vmem:[#allocation2 + $0x68] sm:$0xff]
    %v1082 = vld [vmem:[#allocation2 + $0x70] sm:$0xff]
    %v1083 = vld [vmem:[#allocation2 + $0x78] sm:$0xff]
    %v1084 = vld [vmem:[#allocation3] sm:$0xff]
    %v1085 = vld [vmem:[#allocation3 + $0x8] sm:$0xff]
    %v1086 = vld [vmem:[#allocation3 + $0x10] sm:$0xff]
    %v1087 = vld [vmem:[#allocation3 + $0x18] sm:$0xff]
    %v1088 = vld [vmem:[#allocation3 + $0x20] sm:$0xff]
    %v1089 = vld [vmem:[#allocation3 + $0x28] sm:$0xff]
    %v1090 = vld [vmem:[#allocation3 + $0x30] sm:$0xff]
    %v1091 = vld [vmem:[#allocation3 + $0x38] sm:$0xff]
    %v1092 = vld [vmem:[#allocation3 + $0x40] sm:$0xff]
    %v1093 = vld [vmem:[#allocation3 + $0x48] sm:$0xff]
    %v1094 = vld [vmem:[#allocation3 + $0x50] sm:$0xff]
    %v1095 = vld [vmem:[#allocation3 + $0x58] sm:$0xff]
    %v1096 = vld [vmem:[#allocation3 + $0x60] sm:$0xff]
    %v1097 = vld [vmem:[#allocation3 + $0x68] sm:$0xff]
    %v1098 = vld [vmem:[#allocation3 + $0x70] sm:$0xff]
    %v1099 = vld [vmem:[#allocation3 + $0x78] sm:$0xff]
    %v1100 = vrcp.pop %v1084
    %v1101 = vmul.f32 1.0, %v1100
    %v1102 = vrcp.pop %v1085
    %v1103 = vmul.f32 1.0, %v1102
    %v1104 = vrcp.pop %v1086
    %v1105 = vmul.f32 1.0, %v1104
    %v1106 = vrcp.pop %v1087
    %v1107 = vmul.f32 1.0, %v1106
    %v1108 = vrcp.pop %v1088
    %v1109 = vmul.f32 1.0, %v1108
    %v1110 = vrcp.pop %v1089
    %v1111 = vmul.f32 1.0, %v1110
    %v1112 = vrcp.pop %v1090
    %v1113 = vmul.f32 1.0, %v1112
    %v1114 = vrcp.pop %v1091
    %v1115 = vmul.f32 1.0, %v1114
    %v1116 = vrcp.pop %v1092
    %v1117 = vmul.f32 1.0, %v1116
    %v1118 = vrcp.pop %v1093
    %v1119 = vmul.f32 1.0, %v1118
    %v1120 = vrcp.pop %v1094
    %v1121 = vmul.f32 1.0, %v1120
    %v1122 = vrcp.pop %v1095
    %v1123 = vmul.f32 1.0, %v1122
    %v1124 = vrcp.pop %v1096
    %v1125 = vmul.f32 1.0, %v1124
    %v1126 = vrcp.pop %v1097
    %v1127 = vmul.f32 1.0, %v1126
    %v1128 = vrcp.pop %v1098
    %v1129 = vmul.f32 1.0, %v1128
    %v1130 = vrcp.pop %v1099
    %v1131 = vmul.f32 1.0, %v1130
    %v1132 = vld [vmem:[#allocation5] sm:$0xff]
    %v1133 = vld [vmem:[#allocation5 + $0x8] sm:$0xff]
    %v1134 = vld [vmem:[#allocation5 + $0x10] sm:$0xff]
    %v1135 = vld [vmem:[#allocation5 + $0x18] sm:$0xff]
    %v1136 = vld [vmem:[#allocation5 + $0x20] sm:$0xff]
    %v1137 = vld [vmem:[#allocation5 + $0x28] sm:$0xff]
    %v1138 = vld [vmem:[#allocation5 + $0x30] sm:$0xff]
    %v1139 = vld [vmem:[#allocation5 + $0x38] sm:$0xff]
    %v1140 = vld [vmem:[#allocation5 + $0x40] sm:$0xff]
    %v1141 = vld [vmem:[#allocation5 + $0x48] sm:$0xff]
    %v1142 = vld [vmem:[#allocation5 + $0x50] sm:$0xff]
    %v1143 = vld [vmem:[#allocation5 + $0x58] sm:$0xff]
    %v1144 = vld [vmem:[#allocation5 + $0x60] sm:$0xff]
    %v1145 = vld [vmem:[#allocation5 + $0x68] sm:$0xff]
    %v1146 = vld [vmem:[#allocation5 + $0x70] sm:$0xff]
    %v1147 = vld [vmem:[#allocation5 + $0x78] sm:$0xff]
    %v1148 = vsub.f32 %v1132, %v1068
    %v1149 = vsub.f32 %v1133, %v1069
    %v1150 = vsub.f32 %v1134, %v1070
    %v1151 = vsub.f32 %v1135, %v1071
    %v1152 = vsub.f32 %v1136, %v1072
    %v1153 = vsub.f32 %v1137, %v1073
    %v1154 = vsub.f32 %v1138, %v1074
    %v1155 = vsub.f32 %v1139, %v1075
    %v1156 = vsub.f32 %v1140, %v1076
    %v1157 = vsub.f32 %v1141, %v1077
    %v1158 = vsub.f32 %v1142, %v1078
    %v1159 = vsub.f32 %v1143, %v1079
    %v1160 = vsub.f32 %v1144, %v1080
    %v1161 = vsub.f32 %v1145, %v1081
    %v1162 = vsub.f32 %v1146, %v1082
    %v1163 = vsub.f32 %v1147, %v1083
    %v1164 = vmul.f32 %v1148, 1.442695
    %v1165 = vpow.pop %v1164
    %v1166 = vmul.f32 %v1149, 1.442695
    %v1167 = vpow.pop %v1166
    %v1168 = vmul.f32 %v1150, 1.442695
    %v1169 = vpow.pop %v1168
    %v1170 = vmul.f32 %v1151, 1.442695
    %v1171 = vpow.pop %v1170
    %v1172 = vmul.f32 %v1152, 1.442695
    %v1173 = vpow.pop %v1172
    %v1174 = vmul.f32 %v1153, 1.442695
    %v1175 = vpow.pop %v1174
    %v1176 = vmul.f32 %v1154, 1.442695
    %v1177 = vpow.pop %v1176
    %v1178 = vmul.f32 %v1155, 1.442695
    %v1179 = vpow.pop %v1178
    %v1180 = vmul.f32 %v1156, 1.442695
    %v1181 = vpow.pop %v1180
    %v1182 = vmul.f32 %v1157, 1.442695
    %v1183 = vpow.pop %v1182
    %v1184 = vmul.f32 %v1158, 1.442695
    %v1185 = vpow.pop %v1184
    %v1186 = vmul.f32 %v1159, 1.442695
    %v1187 = vpow.pop %v1186
    %v1188 = vmul.f32 %v1160, 1.442695
    %v1189 = vpow.pop %v1188
    %v1190 = vmul.f32 %v1161, 1.442695
    %v1191 = vpow.pop %v1190
    %v1192 = vmul.f32 %v1162, 1.442695
    %v1193 = vpow.pop %v1192
    %v1194 = vmul.f32 %v1163, 1.442695
    %v1195 = vpow.pop %v1194
    %v1196 = vmul.f32 %v1165, %v1101
    %v1197 = vmul.f32 %v1167, %v1103
    %v1198 = vmul.f32 %v1169, %v1105
    %v1199 = vmul.f32 %v1171, %v1107
    %v1200 = vmul.f32 %v1173, %v1109
    %v1201 = vmul.f32 %v1175, %v1111
    %v1202 = vmul.f32 %v1177, %v1113
    %v1203 = vmul.f32 %v1179, %v1115
    %v1204 = vmul.f32 %v1181, %v1117
    %v1205 = vmul.f32 %v1183, %v1119
    %v1206 = vmul.f32 %v1185, %v1121
    %v1207 = vmul.f32 %v1187, %v1123
    %v1208 = vmul.f32 %v1189, %v1125
    %v1209 = vmul.f32 %v1191, %v1127
    %v1210 = vmul.f32 %v1193, %v1129
    %v1211 = vmul.f32 %v1195, %v1131
    %v1212 = vld [vmem:[%s4] sm:$0xf]
    %v1213 = vld [vmem:[%s4 + $0x4] sm:$0xf]
    %v1214 = vld [vmem:[%s4 + $0x8] sm:$0xf]
    %v1215 = vld [vmem:[%s4 + $0xc] sm:$0xf]
    %v1216 = vld [vmem:[%s4 + $0x10] sm:$0xf]
    %v1217 = vld [vmem:[%s4 + $0x14] sm:$0xf]
    %v1218 = vld [vmem:[%s4 + $0x18] sm:$0xf]
    %v1219 = vld [vmem:[%s4 + $0x1c] sm:$0xf]
    %v1220 = vld [vmem:[%s4 + $0x20] sm:$0xf]
    %v1221 = vld [vmem:[%s4 + $0x24] sm:$0xf]
    %v1222 = vld [vmem:[%s4 + $0x28] sm:$0xf]
    %v1223 = vld [vmem:[%s4 + $0x2c] sm:$0xf]
    %v1224 = vld [vmem:[%s4 + $0x30] sm:$0xf]
    %v1225 = vld [vmem:[%s4 + $0x34] sm:$0xf]
    %v1226 = vld [vmem:[%s4 + $0x38] sm:$0xf]
    %v1227 = vld [vmem:[%s4 + $0x3c] sm:$0xf]
    %v1228 = vunpack.c.l.bf16 %v1212
    %v1229 = vunpack.c.l.bf16 %v1213
    %v1230 = vunpack.c.l.bf16 %v1214
    %v1231 = vunpack.c.l.bf16 %v1215
    %v1232 = vunpack.c.l.bf16 %v1216
    %v1233 = vunpack.c.l.bf16 %v1217
    %v1234 = vunpack.c.l.bf16 %v1218
    %v1235 = vunpack.c.l.bf16 %v1219
    %v1236 = vunpack.c.l.bf16 %v1220
    %v1237 = vunpack.c.l.bf16 %v1221
    %v1238 = vunpack.c.l.bf16 %v1222
    %v1239 = vunpack.c.l.bf16 %v1223
    %v1240 = vunpack.c.l.bf16 %v1224
    %v1241 = vunpack.c.l.bf16 %v1225
    %v1242 = vunpack.c.l.bf16 %v1226
    %v1243 = vunpack.c.l.bf16 %v1227
    %1245 = vset.pattern.permute.xlu0 0
    %1246 = vperm.xlu0 %1245, %v1196
    %v1247 = vpop.permute.xlu0 %1246
    %1250 = vset.pattern.permute.xlu0 0
    %1251 = vperm.xlu0 %1250, %v1197
    %v1252 = vpop.permute.xlu0 %1251
    %1255 = vset.pattern.permute.xlu0 0
    %1256 = vperm.xlu0 %1255, %v1198
    %v1257 = vpop.permute.xlu0 %1256
    %1260 = vset.pattern.permute.xlu0 0
    %1261 = vperm.xlu0 %1260, %v1199
    %v1262 = vpop.permute.xlu0 %1261
    %1265 = vset.pattern.permute.xlu0 0
    %1266 = vperm.xlu0 %1265, %v1200
    %v1267 = vpop.permute.xlu0 %1266
    %1270 = vset.pattern.permute.xlu0 0
    %1271 = vperm.xlu0 %1270, %v1201
    %v1272 = vpop.permute.xlu0 %1271
    %1275 = vset.pattern.permute.xlu0 0
    %1276 = vperm.xlu0 %1275, %v1202
    %v1277 = vpop.permute.xlu0 %1276
    %1280 = vset.pattern.permute.xlu0 0
    %1281 = vperm.xlu0 %1280, %v1203
    %v1282 = vpop.permute.xlu0 %1281
    %1285 = vset.pattern.permute.xlu0 0
    %1286 = vperm.xlu0 %1285, %v1204
    %v1287 = vpop.permute.xlu0 %1286
    %1290 = vset.pattern.permute.xlu0 0
    %1291 = vperm.xlu0 %1290, %v1205
    %v1292 = vpop.permute.xlu0 %1291
    %1295 = vset.pattern.permute.xlu0 0
    %1296 = vperm.xlu0 %1295, %v1206
    %v1297 = vpop.permute.xlu0 %1296
    %1300 = vset.pattern.permute.xlu0 0
    %1301 = vperm.xlu0 %1300, %v1207
    %v1302 = vpop.permute.xlu0 %1301
    %1305 = vset.pattern.permute.xlu0 0
    %1306 = vperm.xlu0 %1305, %v1208
    %v1307 = vpop.permute.xlu0 %1306
    %1310 = vset.pattern.permute.xlu0 0
    %1311 = vperm.xlu0 %1310, %v1209
    %v1312 = vpop.permute.xlu0 %1311
    %1315 = vset.pattern.permute.xlu0 0
    %1316 = vperm.xlu0 %1315, %v1210
    %v1317 = vpop.permute.xlu0 %1316
    %1320 = vset.pattern.permute.xlu0 0
    %1321 = vperm.xlu0 %1320, %v1211
    %v1322 = vpop.permute.xlu0 %1321
    %v1324 = vmul.f32 %v1228, %v1247
    %v1325 = vmul.f32 %v1229, %v1252
    %v1326 = vmul.f32 %v1230, %v1257
    %v1327 = vmul.f32 %v1231, %v1262
    %v1328 = vmul.f32 %v1232, %v1267
    %v1329 = vmul.f32 %v1233, %v1272
    %v1330 = vmul.f32 %v1234, %v1277
    %v1331 = vmul.f32 %v1235, %v1282
    %v1332 = vmul.f32 %v1236, %v1287
    %v1333 = vmul.f32 %v1237, %v1292
    %v1334 = vmul.f32 %v1238, %v1297
    %v1335 = vmul.f32 %v1239, %v1302
    %v1336 = vmul.f32 %v1240, %v1307
    %v1337 = vmul.f32 %v1241, %v1312
    %v1338 = vmul.f32 %v1242, %v1317
    %v1339 = vmul.f32 %v1243, %v1322
    %v1340 = vpack.c.bf16 %v1325, %v1324
    %v1341 = vpack.c.bf16 %v1327, %v1326
    %v1342 = vpack.c.bf16 %v1329, %v1328
    %v1343 = vpack.c.bf16 %v1331, %v1330
    %v1344 = vpack.c.bf16 %v1333, %v1332
    %v1345 = vpack.c.bf16 %v1335, %v1334
    %v1346 = vpack.c.bf16 %v1337, %v1336
    %v1347 = vpack.c.bf16 %v1339, %v1338
    %v1356 = vunpack.c.l.b16 %v1340
    %v1357 = vunpack.c.h.b16 %v1340
    %v1358 = vunpack.c.l.b16 %v1341
    %v1359 = vunpack.c.h.b16 %v1341
    %v1360 = vunpack.c.l.b16 %v1342
    %v1361 = vunpack.c.h.b16 %v1342
    %v1362 = vunpack.c.l.b16 %v1343
    %v1363 = vunpack.c.h.b16 %v1343
    %v1364 = vunpack.c.l.b16 %v1344
    %v1365 = vunpack.c.h.b16 %v1344
    %v1366 = vunpack.c.l.b16 %v1345
    %v1367 = vunpack.c.h.b16 %v1345
    %v1368 = vunpack.c.l.b16 %v1346
    %v1369 = vunpack.c.h.b16 %v1346
    %v1370 = vunpack.c.l.b16 %v1347
    %v1371 = vunpack.c.h.b16 %v1347
    %v1372 = vpack.c.b16 %v1356, %v1356
    %v1373 = vpack.c.b16 %v1357, %v1357
    %v1374 = vpack.c.b16 %v1358, %v1358
    %v1375 = vpack.c.b16 %v1359, %v1359
    %v1376 = vpack.c.b16 %v1360, %v1360
    %v1377 = vpack.c.b16 %v1361, %v1361
    %v1378 = vpack.c.b16 %v1362, %v1362
    %v1379 = vpack.c.b16 %v1363, %v1363
    %v1380 = vpack.c.b16 %v1364, %v1364
    %v1381 = vpack.c.b16 %v1365, %v1365
    %v1382 = vpack.c.b16 %v1366, %v1366
    %v1383 = vpack.c.b16 %v1367, %v1367
    %v1384 = vpack.c.b16 %v1368, %v1368
    %v1385 = vpack.c.b16 %v1369, %v1369
    %v1386 = vpack.c.b16 %v1370, %v1370
    %v1387 = vpack.c.b16 %v1371, %v1371
    %1404 = vst [vmem:[%s4] sm:$0xf] %v1372
    %1405 = vst [vmem:[%s4 + $0x4] sm:$0xf] %v1373
    %1406 = vst [vmem:[%s4 + $0x8] sm:$0xf] %v1374
    %1407 = vst [vmem:[%s4 + $0xc] sm:$0xf] %v1375
    %1408 = vst [vmem:[%s4 + $0x10] sm:$0xf] %v1376
    %1409 = vst [vmem:[%s4 + $0x14] sm:$0xf] %v1377
    %1410 = vst [vmem:[%s4 + $0x18] sm:$0xf] %v1378
    %1411 = vst [vmem:[%s4 + $0x1c] sm:$0xf] %v1379
    %1412 = vst [vmem:[%s4 + $0x20] sm:$0xf] %v1380
    %1413 = vst [vmem:[%s4 + $0x24] sm:$0xf] %v1381
    %1414 = vst [vmem:[%s4 + $0x28] sm:$0xf] %v1382
    %1415 = vst [vmem:[%s4 + $0x2c] sm:$0xf] %v1383
    %1416 = vst [vmem:[%s4 + $0x30] sm:$0xf] %v1384
    %1417 = vst [vmem:[%s4 + $0x34] sm:$0xf] %v1385
    %1418 = vst [vmem:[%s4 + $0x38] sm:$0xf] %v1386
    %1419 = vst [vmem:[%s4 + $0x3c] sm:$0xf] %v1387
    %v1420 = vld [vmem:[#allocation4] sm:$0xff]
    %v1421 = vld [vmem:[#allocation4 + $0x8] sm:$0xff]
    %v1422 = vld [vmem:[#allocation4 + $0x10] sm:$0xff]
    %v1423 = vld [vmem:[#allocation4 + $0x18] sm:$0xff]
    %v1424 = vld [vmem:[#allocation4 + $0x20] sm:$0xff]
    %v1425 = vld [vmem:[#allocation4 + $0x28] sm:$0xff]
    %v1426 = vld [vmem:[#allocation4 + $0x30] sm:$0xff]
    %v1427 = vld [vmem:[#allocation4 + $0x38] sm:$0xff]
    %v1428 = vld [vmem:[#allocation4 + $0x40] sm:$0xff]
    %v1429 = vld [vmem:[#allocation4 + $0x48] sm:$0xff]
    %v1430 = vld [vmem:[#allocation4 + $0x50] sm:$0xff]
    %v1431 = vld [vmem:[#allocation4 + $0x58] sm:$0xff]
    %v1432 = vld [vmem:[#allocation4 + $0x60] sm:$0xff]
    %v1433 = vld [vmem:[#allocation4 + $0x68] sm:$0xff]
    %v1434 = vld [vmem:[#allocation4 + $0x70] sm:$0xff]
    %v1435 = vld [vmem:[#allocation4 + $0x78] sm:$0xff]
    %1437 = vset.pattern.permute.xlu0 0
    %1438 = vperm.xlu0 %1437, %v1101
    %v1439 = vpop.permute.xlu0 %1438
    %1442 = vset.pattern.permute.xlu0 0
    %1443 = vperm.xlu0 %1442, %v1103
    %v1444 = vpop.permute.xlu0 %1443
    %1447 = vset.pattern.permute.xlu0 0
    %1448 = vperm.xlu0 %1447, %v1105
    %v1449 = vpop.permute.xlu0 %1448
    %1452 = vset.pattern.permute.xlu0 0
    %1453 = vperm.xlu0 %1452, %v1107
    %v1454 = vpop.permute.xlu0 %1453
    %1457 = vset.pattern.permute.xlu0 0
    %1458 = vperm.xlu0 %1457, %v1109
    %v1459 = vpop.permute.xlu0 %1458
    %1462 = vset.pattern.permute.xlu0 0
    %1463 = vperm.xlu0 %1462, %v1111
    %v1464 = vpop.permute.xlu0 %1463
    %1467 = vset.pattern.permute.xlu0 0
    %1468 = vperm.xlu0 %1467, %v1113
    %v1469 = vpop.permute.xlu0 %1468
    %1472 = vset.pattern.permute.xlu0 0
    %1473 = vperm.xlu0 %1472, %v1115
    %v1474 = vpop.permute.xlu0 %1473
    %1477 = vset.pattern.permute.xlu0 0
    %1478 = vperm.xlu0 %1477, %v1117
    %v1479 = vpop.permute.xlu0 %1478
    %1482 = vset.pattern.permute.xlu0 0
    %1483 = vperm.xlu0 %1482, %v1119
    %v1484 = vpop.permute.xlu0 %1483
    %1487 = vset.pattern.permute.xlu0 0
    %1488 = vperm.xlu0 %1487, %v1121
    %v1489 = vpop.permute.xlu0 %1488
    %1492 = vset.pattern.permute.xlu0 0
    %1493 = vperm.xlu0 %1492, %v1123
    %v1494 = vpop.permute.xlu0 %1493
    %1497 = vset.pattern.permute.xlu0 0
    %1498 = vperm.xlu0 %1497, %v1125
    %v1499 = vpop.permute.xlu0 %1498
    %1502 = vset.pattern.permute.xlu0 0
    %1503 = vperm.xlu0 %1502, %v1127
    %v1504 = vpop.permute.xlu0 %1503
    %1507 = vset.pattern.permute.xlu0 0
    %1508 = vperm.xlu0 %1507, %v1129
    %v1509 = vpop.permute.xlu0 %1508
    %1512 = vset.pattern.permute.xlu0 0
    %1513 = vperm.xlu0 %1512, %v1131
    %v1514 = vpop.permute.xlu0 %1513
    %v1516 = vmul.f32 %v1420, %v1439
    %v1517 = vmul.f32 %v1421, %v1444
    %v1518 = vmul.f32 %v1422, %v1449
    %v1519 = vmul.f32 %v1423, %v1454
    %v1520 = vmul.f32 %v1424, %v1459
    %v1521 = vmul.f32 %v1425, %v1464
    %v1522 = vmul.f32 %v1426, %v1469
    %v1523 = vmul.f32 %v1427, %v1474
    %v1524 = vmul.f32 %v1428, %v1479
    %v1525 = vmul.f32 %v1429, %v1484
    %v1526 = vmul.f32 %v1430, %v1489
    %v1527 = vmul.f32 %v1431, %v1494
    %v1528 = vmul.f32 %v1432, %v1499
    %v1529 = vmul.f32 %v1433, %v1504
    %v1530 = vmul.f32 %v1434, %v1509
    %v1531 = vmul.f32 %v1435, %v1514
    %1532 = vst [vmem:[%s5] sm:$0xff] %v1516
    %1533 = vst [vmem:[%s5 + $0x8] sm:$0xff] %v1517
    %1534 = vst [vmem:[%s5 + $0x10] sm:$0xff] %v1518
    %1535 = vst [vmem:[%s5 + $0x18] sm:$0xff] %v1519
    %1536 = vst [vmem:[%s5 + $0x20] sm:$0xff] %v1520
    %1537 = vst [vmem:[%s5 + $0x28] sm:$0xff] %v1521
    %1538 = vst [vmem:[%s5 + $0x30] sm:$0xff] %v1522
    %1539 = vst [vmem:[%s5 + $0x38] sm:$0xff] %v1523
    %1540 = vst [vmem:[%s5 + $0x40] sm:$0xff] %v1524
    %1541 = vst [vmem:[%s5 + $0x48] sm:$0xff] %v1525
    %1542 = vst [vmem:[%s5 + $0x50] sm:$0xff] %v1526
    %1543 = vst [vmem:[%s5 + $0x58] sm:$0xff] %v1527
    %1544 = vst [vmem:[%s5 + $0x60] sm:$0xff] %v1528
    %1545 = vst [vmem:[%s5 + $0x68] sm:$0xff] %v1529
    %1546 = vst [vmem:[%s5 + $0x70] sm:$0xff] %v1530
    %1547 = vst [vmem:[%s5 + $0x78] sm:$0xff] %v1531
  $region25: #{self_attention.1} parent=0 // pred_fallthru
    _
  // Predicated region
  $region26: #{self_attention.1} parent=0 // pred_check
    _
  $region27: #{self_attention.1} parent=0 // pred_check_branch
    %1549 = sbr.rel (0) target = $region29
  $region28: #{self_attention.1} parent=0 // pred_region
    _
  $region29: #{self_attention.1} parent=0 // pred_fallthru
    _
  // Predicated region
  $region30: #{self_attention.1} parent=0 // pred_check
    _
  $region31: #{self_attention.1} parent=0 // pred_check_branch
    %1551 = sbr.rel (0) target = $region33
  $region32: #{self_attention.1} parent=0 // pred_region
    _
  $region33: #{self_attention.1} parent=0 // pred_fallthru
    _
  // Predicated region
  $region34: #{self_attention.1} parent=0 // pred_check
    _
  $region35: #{self_attention.1} parent=0 // pred_check_branch
    %1553 = sbr.rel (0) target = $region37
  $region36: #{self_attention.1} parent=0 // pred_region
    _
  $region37: #{self_attention.1} parent=0 // pred_fallthru
    _
  // Predicated region
  $region38: #{self_attention.1} parent=0 // pred_check
    _
  $region39: #{self_attention.1} parent=0 // pred_check_branch
    %1555 = sbr.rel (0) target = $region41
  $region40: #{self_attention.1} parent=0 // pred_region
    _
  $region41: #{self_attention.1} parent=0 // pred_fallthru
    _

</llo_original>
